<compile_context>
chip_gen: v7x
topology: tpu7x:2x2x1
jax: 0.10.0
libtpu: 0.0.40
codegen_flags: <defaults>
</compile_context>

<pallas_src>
import jax
import jax.numpy as jnp
from jax import lax
from jax.experimental import pallas as pl
from jax.experimental.pallas import tpu as pltpu

LANE = 128  # TPU lane width; all feature dims are padded to a multiple of this.


def _round_up(x, m):
    return ((x + m - 1) // m) * m


def _pad2d(a, rows, cols):
    """Zero-pad a 2-D array up to (rows, cols). Zero padding is exact for this model."""
    out = jnp.zeros((rows, cols), a.dtype)
    return out.at[: a.shape[0], : a.shape[1]].set(a)


def ncf_kernel(idx_ref, utab_ref, itab_ref, w2t_ref, b2_ref, wout_ref, out_ref):
    # idx_ref: (2, TB) int32; row 0 = user ids, row 1 = item ids.
    uid = idx_ref[0:1, :]                       # (1, TB)
    iid = idx_ref[1:2, :]                       # (1, TB)
    tb = idx_ref.shape[1]
    nu = utab_ref.shape[1]
    ni = itab_ref.shape[1]
    p = utab_ref.shape[0] // 2                  # padded feature width (multiple of 128)

    # Fused, transposed embedding gather: one-hot column-gather on the MXU, bf16 operands,
    # f32 accumulation.  Each fused table column is [gmf_emb ; mlp_emb @ W1 (+ b1)], so a
    # single dot per one-hot serves both branches and already contains the W1 layer.
    u_oh = (lax.broadcasted_iota(jnp.int32, (nu, tb), 0) == uid).astype(jnp.bfloat16)
    i_oh = (lax.broadcasted_iota(jnp.int32, (ni, tb), 0) == iid).astype(jnp.bfloat16)
    u_all = jnp.dot(utab_ref[...], u_oh, preferred_element_type=jnp.float32)   # (2P, TB)
    i_all = jnp.dot(itab_ref[...], i_oh, preferred_element_type=jnp.float32)   # (2P, TB)

    # GMF branch (feature-major).
    gmf = u_all[:p, :] * i_all[:p, :]                                          # (P, TB)

    # MLP branch. W1/b1 already folded into the gather, so layer 1 is just add + relu.
    h1 = jnp.maximum(u_all[p:, :] + i_all[p:, :], 0.0)                         # (P, TB)
    h2 = jnp.maximum(
        jnp.dot(w2t_ref[...], h1.astype(jnp.bfloat16),
                preferred_element_type=jnp.float32) + b2_ref[...], 0.0)        # (P, TB)

    # Final layer as two skinny standard-contraction MXU matmuls producing the lane-dense
    # (1, TB) score row directly (no XLU transpose, no masked (TB,1) stores).
    # wout row 0 = w_gmf, row 1 = w_mlp, rows 2..7 = 0.
    s_g = jnp.dot(wout_ref[...], gmf, preferred_element_type=jnp.float32)      # (8, TB)
    s_m = jnp.dot(wout_ref[...], h2, preferred_element_type=jnp.float32)       # (8, TB)
    out_ref[...] = s_g[0:1, :] + s_m[1:2, :]                                   # (1, TB)


def ncf_forward(idx, params, *, tb=None):
    """NCF forward pass. idx: (B, 2) int32 [user, item] -> (B, 1) float32 scores."""
    B = idx.shape[0]
    if tb is None:
        # 128 keeps >=2 parallel grid blocks at small B (v7x megacore); 256 fills the
        # 256-wide MXU M dimension on v6e/v7x once B is large enough.
        tb = 256 if B >= 512 else 128
    nblk = pl.cdiv(B, tb)
    b_pad = nblk * tb

    D = params["ue_gmf"].shape[1]
    H1 = params["w2"].shape[0]
    H2 = params["w2"].shape[1]
    # One common padded lane/sublane width for D / H1 / H2 keeps every matmul operand and
    # the elementwise combines unmasked.
    P = max(_round_up(D, LANE), _round_up(H1, LANE), _round_up(H2, LANE))

    NU = _round_up(params["ue_gmf"].shape[0], LANE)
    NI = _round_up(params["ie_gmf"].shape[0], LANE)

    # Fold W1 (and b1, via the user table) into the MLP half of the fused gather tables.
    # Exact: a linear precompute over static rows (f32), cast to bf16 afterwards.
    u_fold = params["ue_mlp"] @ params["w1u"] + params["b1"]       # (nu, H1)
    i_fold = params["ie_mlp"] @ params["w1i"]                      # (ni, H1)
    utab = jnp.concatenate([_pad2d(params["ue_gmf"].T, P, NU),
                            _pad2d(u_fold.T, P, NU)], axis=0).astype(jnp.bfloat16)  # (2P,NU)
    itab = jnp.concatenate([_pad2d(params["ie_gmf"].T, P, NI),
                            _pad2d(i_fold.T, P, NI)], axis=0).astype(jnp.bfloat16)  # (2P,NI)
    w2t = _pad2d(params["w2"].T, P, P).astype(jnp.bfloat16)        # (P, P) = W2^T
    b2col = _pad2d(params["b2"].T, P, 1)                            # (P, 1) f32
    wout = jnp.zeros((8, P), jnp.float32)
    wout = wout.at[0, :D].set(params["wg"][0])
    wout = wout.at[1, :H2].set(params["wm"][0])

    # Transposed index slab: row 0 = user ids, row 1 = item ids; batch padded to tile.
    idx_t = jnp.zeros((2, b_pad), jnp.int32).at[:, :B].set(idx.astype(jnp.int32).T)

    plist = [utab, itab, w2t, b2col, wout]

    def full2d(a):
        # Loop-invariant parameter block: full array, constant block index.
        # TODO(synk): pipeline_mode=pl.Buffered(1) here once tables are large enough for
        #             double-buffered residency to matter (v7x 64 MiB VMEM first).
        return pl.BlockSpec(a.shape, lambda b: (0, 0))

    in_specs = [pl.BlockSpec((2, tb), lambda b: (0, b))] + [full2d(a) for a in plist]

    out = pl.pallas_call(
        ncf_kernel,
        out_shape=jax.ShapeDtypeStruct((1, b_pad), jnp.float32),
        grid_spec=pltpu.PrefetchScalarGridSpec(
            num_scalar_prefetch=0,
            grid=(nblk,),
            in_specs=in_specs,
            out_specs=pl.BlockSpec((1, tb), lambda b: (0, b)),
        ),
        compiler_params=pltpu.CompilerParams(
            dimension_semantics=("parallel",),
            vmem_limit_bytes=32 * 1024 * 1024,
        ),
    )(idx_t, *plist)

    # b_out added here (dropped from the kernel); padded batch rows are sliced off.
    return out[0, :B].reshape(B, 1) + params["bout"]


def ncf_reference(idx, params):
    u_g = jnp.take(params["ue_gmf"], idx[:, 0], axis=0)
    i_g = jnp.take(params["ie_gmf"], idx[:, 1], axis=0)
    u_m = jnp.take(params["ue_mlp"], idx[:, 0], axis=0)
    i_m = jnp.take(params["ie_mlp"], idx[:, 1], axis=0)
    gmf = u_g * i_g
    h1 = jnp.maximum(u_m @ params["w1u"] + i_m @ params["w1i"] + params["b1"], 0.0)
    h2 = jnp.maximum(h1 @ params["w2"] + params["b2"], 0.0)
    return (jnp.sum(gmf * params["wg"], axis=-1, keepdims=True)
            + jnp.sum(h2 * params["wm"], axis=-1, keepdims=True)
            + params["bout"])


def init_params(key, num_users, num_items, embedding_size):
    D = embedding_size
    H1 = D
    H2 = D // 2
    ks = jax.random.split(key, 12)
    s = 0.05
    return {
        "ue_gmf": s * jax.random.normal(ks[0], (num_users, D), jnp.float32),
        "ie_gmf": s * jax.random.normal(ks[1], (num_items, D), jnp.float32),
        "ue_mlp": s * jax.random.normal(ks[2], (num_users, D), jnp.float32),
        "ie_mlp": s * jax.random.normal(ks[3], (num_items, D), jnp.float32),
        "w1u": s * jax.random.normal(ks[4], (D, H1), jnp.float32),
        "w1i": s * jax.random.normal(ks[5], (D, H1), jnp.float32),
        "b1": jnp.zeros((1, H1), jnp.float32),
        "w2": s * jax.random.normal(ks[6], (H1, H2), jnp.float32),
        "b2": jnp.zeros((1, H2), jnp.float32),
        "wg": s * jax.random.normal(ks[7], (1, D), jnp.float32),
        "wm": s * jax.random.normal(ks[8], (1, H2), jnp.float32),
        "bout": jnp.zeros((1, 1), jnp.float32),
    }


if __name__ == "__main__":
    num_users, num_items, embedding_size = 64, 96, 32
    B = 200  # not a tile multiple on purpose: exercises the batch-padding path

    key = jax.random.PRNGKey(0)
    k_param, k_u, k_i = jax.random.split(key, 3)
    params = init_params(k_param, num_users, num_items, embedding_size)

    users = jax.random.randint(k_u, (B, 1), 0, num_users, dtype=jnp.int32)
    items = jax.random.randint(k_i, (B, 1), 0, num_items, dtype=jnp.int32)
    idx = jnp.concatenate([users, items], axis=1)        # (B, 2) int32

    out = ncf_forward(idx, params)
    out = jax.block_until_ready(out)

    ref = ncf_reference(idx, params)
    assert out.shape == (B, 1)
    # bf16 parameters in the kernel -> loosened tolerance vs. the f32 reference.
    assert jnp.allclose(out, ref, atol=2e-3, rtol=2e-2), "mismatch vs pure-JAX reference"

    print("KERNEL_OK")
</pallas_src>

<mosaic_0001>
module attributes {stable_mosaic.version = 11 : i64} {
  func.func @ncf_kernel(%arg0: i32, %arg1: memref<2x128xi32, #tpu.memory_space<vmem>>, %arg2: memref<256x128xbf16, #tpu.memory_space<vmem>>, %arg3: memref<256x128xbf16, #tpu.memory_space<vmem>>, %arg4: memref<128x128xbf16, #tpu.memory_space<vmem>>, %arg5: memref<128x1xf32, #tpu.memory_space<vmem>>, %arg6: memref<8x128xf32, #tpu.memory_space<vmem>>, %arg7: memref<1x128xf32, #tpu.memory_space<vmem>>) attributes {dimension_semantics = [#tpu.dimension_semantics<parallel>], iteration_bounds = array<i64: 2>, scalar_prefetch = 0 : i64, scratch_operands = 0 : i64, tpu.core_type = #tpu.core_type<tc>, window_params = [{transform_indices = @transform_0, window_bounds = array<i64: 2, 128>}, {pipeline_mode = #tpu.pipeline_mode<synchronous>, transform_indices = @transform_1, window_bounds = array<i64: 256, 128>}, {pipeline_mode = #tpu.pipeline_mode<synchronous>, transform_indices = @transform_2, window_bounds = array<i64: 256, 128>}, {pipeline_mode = #tpu.pipeline_mode<synchronous>, transform_indices = @transform_3, window_bounds = array<i64: 128, 128>}, {pipeline_mode = #tpu.pipeline_mode<synchronous>, transform_indices = @transform_4, window_bounds = array<i64: 128, 1>}, {pipeline_mode = #tpu.pipeline_mode<synchronous>, transform_indices = @transform_5, window_bounds = array<i64: 8, 128>}, {transform_indices = @transform_6, window_bounds = array<i64: 1, 128>}]} {
    %c0 = arith.constant 0 : index
    %c0_0 = arith.constant 0 : index
    %0 = vector.load %arg1[%c0, %c0_0] : memref<2x128xi32, #tpu.memory_space<vmem>>, vector<1x128xi32>
    %c1 = arith.constant 1 : index
    %c0_1 = arith.constant 0 : index
    %1 = vector.load %arg1[%c1, %c0_1] : memref<2x128xi32, #tpu.memory_space<vmem>>, vector<1x128xi32>
    %2 = tpu.iota {dimensions = array<i32: 0>} : vector<128x128xi32>
    %3 = vector.broadcast %0 : vector<1x128xi32> to vector<128x128xi32>
    %4 = arith.cmpi eq, %2, %3 : vector<128x128xi32>
    %5 = arith.extui %4 : vector<128x128xi1> to vector<128x128xi32>
    %6 = arith.sitofp %5 : vector<128x128xi32> to vector<128x128xf32>
    %7 = arith.truncf %6 : vector<128x128xf32> to vector<128x128xbf16>
    %8 = tpu.iota {dimensions = array<i32: 0>} : vector<128x128xi32>
    %9 = vector.broadcast %1 : vector<1x128xi32> to vector<128x128xi32>
    %10 = arith.cmpi eq, %8, %9 : vector<128x128xi32>
    %11 = arith.extui %10 : vector<128x128xi1> to vector<128x128xi32>
    %12 = arith.sitofp %11 : vector<128x128xi32> to vector<128x128xf32>
    %13 = arith.truncf %12 : vector<128x128xf32> to vector<128x128xbf16>
    %c0_2 = arith.constant 0 : index
    %c0_3 = arith.constant 0 : index
    %14 = vector.load %arg2[%c0_2, %c0_3] : memref<256x128xbf16, #tpu.memory_space<vmem>>, vector<256x128xbf16>
    %cst = arith.constant dense<0.000000e+00> : vector<256x128xf32>
    %15 = tpu.matmul %14, %7, %cst {dimension_numbers = #tpu.dot_dimension_numbers<[1], [0], [0], [1], [0, 0, 1, 1], [], []>} : vector<256x128xbf16>, vector<128x128xbf16>, vector<256x128xf32> -> vector<256x128xf32>
    %c0_4 = arith.constant 0 : index
    %c0_5 = arith.constant 0 : index
    %16 = vector.load %arg3[%c0_4, %c0_5] : memref<256x128xbf16, #tpu.memory_space<vmem>>, vector<256x128xbf16>
    %cst_6 = arith.constant dense<0.000000e+00> : vector<256x128xf32>
    %17 = tpu.matmul %16, %13, %cst_6 {dimension_numbers = #tpu.dot_dimension_numbers<[1], [0], [0], [1], [0, 0, 1, 1], [], []>} : vector<256x128xbf16>, vector<128x128xbf16>, vector<256x128xf32> -> vector<256x128xf32>
    %18 = vector.extract_strided_slice %15 {offsets = [0, 0], sizes = [128, 128], strides = [1, 1]} : vector<256x128xf32> to vector<128x128xf32>
    %19 = vector.extract_strided_slice %17 {offsets = [0, 0], sizes = [128, 128], strides = [1, 1]} : vector<256x128xf32> to vector<128x128xf32>
    %20 = arith.mulf %18, %19 : vector<128x128xf32>
    %21 = vector.extract_strided_slice %15 {offsets = [128, 0], sizes = [128, 128], strides = [1, 1]} : vector<256x128xf32> to vector<128x128xf32>
    %22 = vector.extract_strided_slice %17 {offsets = [128, 0], sizes = [128, 128], strides = [1, 1]} : vector<256x128xf32> to vector<128x128xf32>
    %23 = arith.addf %21, %22 : vector<128x128xf32>
    %cst_7 = arith.constant 0.000000e+00 : f32
    %24 = vector.broadcast %cst_7 : f32 to vector<128x128xf32>
    %25 = arith.maximumf %23, %24 : vector<128x128xf32>
    %c0_8 = arith.constant 0 : index
    %c0_9 = arith.constant 0 : index
    %26 = vector.load %arg4[%c0_8, %c0_9] : memref<128x128xbf16, #tpu.memory_space<vmem>>, vector<128x128xbf16>
    %27 = arith.truncf %25 : vector<128x128xf32> to vector<128x128xbf16>
    %cst_10 = arith.constant dense<0.000000e+00> : vector<128x128xf32>
    %28 = tpu.matmul %26, %27, %cst_10 {dimension_numbers = #tpu.dot_dimension_numbers<[1], [0], [0], [1], [0, 0, 1, 1], [], []>} : vector<128x128xbf16>, vector<128x128xbf16>, vector<128x128xf32> -> vector<128x128xf32>
    %c0_11 = arith.constant 0 : index
    %c0_12 = arith.constant 0 : index
    %29 = vector.load %arg5[%c0_11, %c0_12] : memref<128x1xf32, #tpu.memory_space<vmem>>, vector<128x1xf32>
    %30 = vector.broadcast %29 : vector<128x1xf32> to vector<128x128xf32>
    %31 = arith.addf %28, %30 : vector<128x128xf32>
    %cst_13 = arith.constant 0.000000e+00 : f32
    %32 = vector.broadcast %cst_13 : f32 to vector<128x128xf32>
    %33 = arith.maximumf %31, %32 : vector<128x128xf32>
    %c0_14 = arith.constant 0 : index
    %c0_15 = arith.constant 0 : index
    %34 = vector.load %arg6[%c0_14, %c0_15] : memref<8x128xf32, #tpu.memory_space<vmem>>, vector<8x128xf32>
    %cst_16 = arith.constant dense<0.000000e+00> : vector<8x128xf32>
    %35 = tpu.matmul %34, %20, %cst_16 {dimension_numbers = #tpu.dot_dimension_numbers<[1], [0], [0], [1], [0, 0, 1, 1], [], []>} : vector<8x128xf32>, vector<128x128xf32>, vector<8x128xf32> -> vector<8x128xf32>
    %c0_17 = arith.constant 0 : index
    %c0_18 = arith.constant 0 : index
    %36 = vector.load %arg6[%c0_17, %c0_18] : memref<8x128xf32, #tpu.memory_space<vmem>>, vector<8x128xf32>
    %cst_19 = arith.constant dense<0.000000e+00> : vector<8x128xf32>
    %37 = tpu.matmul %36, %33, %cst_19 {dimension_numbers = #tpu.dot_dimension_numbers<[1], [0], [0], [1], [0, 0, 1, 1], [], []>} : vector<8x128xf32>, vector<128x128xf32>, vector<8x128xf32> -> vector<8x128xf32>
    %38 = vector.extract_strided_slice %35 {offsets = [0, 0], sizes = [1, 128], strides = [1, 1]} : vector<8x128xf32> to vector<1x128xf32>
    %39 = vector.extract_strided_slice %37 {offsets = [1, 0], sizes = [1, 128], strides = [1, 1]} : vector<8x128xf32> to vector<1x128xf32>
    %40 = arith.addf %38, %39 : vector<1x128xf32>
    %c0_20 = arith.constant 0 : index
    %c0_21 = arith.constant 0 : index
    %41 = vector.load %arg7[%c0_20, %c0_21] : memref<1x128xf32, #tpu.memory_space<vmem>>, vector<1x128xf32>
    tpu.vector_store %arg7[%c0_20, %c0_21], %40 {strides = array<i32>} : memref<1x128xf32, #tpu.memory_space<vmem>>, vector<1x128xf32>,
    return
  }
  func.func @transform_0(%arg0: i32) -> (i32, i32) {
    %c0_i32 = arith.constant 0 : i32
    %c0_i32_0 = arith.constant 0 : i32
    return %c0_i32, %arg0 : i32, i32
  }
  func.func @transform_1(%arg0: i32) -> (i32, i32) {
    %c0_i32 = arith.constant 0 : i32
    %c0_i32_0 = arith.constant 0 : i32
    %c0_i32_1 = arith.constant 0 : i32
    return %c0_i32, %c0_i32_0 : i32, i32
  }
  func.func @transform_2(%arg0: i32) -> (i32, i32) {
    %c0_i32 = arith.constant 0 : i32
    %c0_i32_0 = arith.constant 0 : i32
    %c0_i32_1 = arith.constant 0 : i32
    return %c0_i32, %c0_i32_0 : i32, i32
  }
  func.func @transform_3(%arg0: i32) -> (i32, i32) {
    %c0_i32 = arith.constant 0 : i32
    %c0_i32_0 = arith.constant 0 : i32
    %c0_i32_1 = arith.constant 0 : i32
    return %c0_i32, %c0_i32_0 : i32, i32
  }
  func.func @transform_4(%arg0: i32) -> (i32, i32) {
    %c0_i32 = arith.constant 0 : i32
    %c0_i32_0 = arith.constant 0 : i32
    %c0_i32_1 = arith.constant 0 : i32
    return %c0_i32, %c0_i32_0 : i32, i32
  }
  func.func @transform_5(%arg0: i32) -> (i32, i32) {
    %c0_i32 = arith.constant 0 : i32
    %c0_i32_0 = arith.constant 0 : i32
    %c0_i32_1 = arith.constant 0 : i32
    return %c0_i32, %c0_i32_0 : i32, i32
  }
  func.func @transform_6(%arg0: i32) -> (i32, i32) {
    %c0_i32 = arith.constant 0 : i32
    %c0_i32_0 = arith.constant 0 : i32
    return %c0_i32, %arg0 : i32, i32
  }
}

</mosaic_0001>

<llo_original>
// kernel: tpu_custom_call.1
$region0: #{tpu_custom_call.1}
  #allocation0 [shape = 'u32[]', space=smem, size = 0x4, offset = 0x4, fixed_abs, tag = 'smem constant byte address 0x4 - core index']
  #allocation1 [shape = 'u32[144,128]{1,0:T(1,128)}', space=vmem, size = 0x12000, scoped, tag = 'internal scratch']
  %s0 = inlined_call_operand.hbm [shape: s32[2,256], index: 0, kind: input, shape index: {}]
  %s1 = inlined_call_operand.vmem [shape: bf16[256,128], index: 1, kind: input, shape index: {}]
  %s2 = inlined_call_operand.hbm [shape: bf16[256,128], index: 2, kind: input, shape index: {}]
  %s3 = inlined_call_operand.hbm [shape: bf16[128,128], index: 3, kind: input, shape index: {}]
  %s4 = inlined_call_operand.vmem [shape: f32[128,1], index: 4, kind: input, shape index: {}]
  %s5 = inlined_call_operand.vmem [shape: f32[8,128], index: 5, kind: input, shape index: {}]
  %s6 = inlined_call_operand.hbm [shape: f32[1,256], index: 6, kind: output, shape index: {}]
  %s7 = sld [smem:[#allocation0]]
  $region69: #{tpu_custom_call.1} parent=0
    _
  %s9 = ssub.s32 1, %s7
  %s10 = scalar_select 0, %s9, %s7
  $region1: #{tpu_custom_call.1} parent=0
    #allocation2 [shape = 'u8[2048]{0}', space=vmem, size = 0x800, scoped, tag = 'input window, operand 0']
    #allocation3 [shape = 's32[2]{0}', space=sflag, size = 0x8, scoped, tag = 'scoped memory for tpu_custom_call.1']
    #allocation4 [shape = 's32[2]{0}', space=sflag, size = 0x8, scoped, tag = 'scoped memory for tpu_custom_call.1']
    #allocation5 [shape = 'u8[65536]{0}', space=vmem, size = 0x10000, scoped, tag = 'input window, operand 2, single buffered']
    #allocation6 [shape = 's32[1]{0}', space=sflag, size = 0x4, scoped, tag = 'scoped memory for tpu_custom_call.1']
    #allocation7 [shape = 'u8[32768]{0}', space=vmem, size = 0x8000, scoped, tag = 'input window, operand 3, single buffered']
    #allocation8 [shape = 'u8[1024]{0}', space=vmem, size = 0x400, scoped, tag = 'output window, operand 0']
    %11 = vsyncpa [#allocation3], 0
    %s12 = scalar_lea.sflag [#allocation3], 1
    %13 = vsyncpa %s12, 0
    %14 = vsyncpa [#allocation6], 0
    %15 = vsyncpa [#allocation4], 0
    %s16 = scalar_lea.sflag [#allocation4], 1
    %17 = vsyncpa %s16, 0
    loop: start=0, step=1, limit=4
    $region2: #{tpu_custom_call.1} parent=1 // loop_pre_header
      _
    $region3: #{tpu_custom_call.1} parent=1 // loop_header
      %s19 = sphi 0, %s23
      %p20 = scmp.ge.s32.totalorder %s19, 4
      %s29 = sphi 0, %s31
      %s32 = sphi 0, %s29
      %s33 = sphi 0, %s32
      %s49 = sphi 0, %s33
      %s53 = sphi 0, %s53
      %s55 = sphi 0, %s53
      %s56 = sphi 0, %s55
      %s70 = sphi 0, %s56
      %s74 = sphi 0, %s74
      %s76 = sphi 0, %s74
      %s77 = sphi 0, %s76
      %s91 = sphi 0, %s77
      %s95 = sphi 0, %s95
      %s97 = sphi 0, %s95
      %s98 = sphi 0, %s97
      %s112 = sphi 0, %s98
      %s116 = sphi 0, %s116
      %s118 = sphi 0, %s116
      %s119 = sphi 0, %s118
      %s133 = sphi 0, %s119
      %s137 = sphi 0, %s137
      %s139 = sphi 0, %s137
      %s140 = sphi 0, %s139
      %s154 = sphi 0, %s140
      %s160 = sphi 0, %s162
      %s163 = sphi 0, %s160
      %s164 = sphi 0, %s163
      %s180 = sphi 0, %s164
    $region4: #{tpu_custom_call.1} parent=1 // loop_header_branch
      %22 = sbr.rel (%p20) target = $region8
    $region5: #{tpu_custom_call.1} parent=1 // loop_body
      %s24 = ssub.s32 %s19, 1
      %s25 = ssub.s32 %s19, 2
      %s26 = sadd.s32 %s19, 1
      %s27 = ssub.s32 %s19, %s26
      %p28 = scmp.eq.s32.totalorder %s27, 0
      %s30 = sadd.s32 %s29, 1
      %s31 = scalar_select %p28, %s29, %s30
      %p34 = pneg %p28
      %p35 = scmp.eq.s32.totalorder %s19, 1
      %p36 = por %p34, %p35
      %p37 = scmp.ne.s32.totalorder %s29, %s32
      %p38 = scmp.eq.s32.totalorder %s19, 0
      %p39 = por %p37, %p38
      %p40 = scmp.ne.s32.totalorder %s29, %s32
      %p41 = scmp.eq.s32.totalorder %s24, 1
      %p42 = por %p40, %p41
      %p43 = scmp.ne.s32.totalorder %s32, %s33
      %p44 = scmp.eq.s32.totalorder %s24, 0
      %p45 = por %p43, %p44
      %p46 = scmp.ne.s32.totalorder %s32, %s33
      %p47 = scmp.eq.s32.totalorder %s25, 1
      %p48 = por %p46, %p47
      %p50 = scmp.ne.s32.totalorder %s33, %s49
      %p51 = scmp.eq.s32.totalorder %s25, 0
      %p52 = por %p50, %p51
      %s54 = sadd.s32 %s53, 1
      %p57 = scmp.eq.s32.totalorder %s19, 1
      %p58 = scmp.ne.s32.totalorder %s53, %s55
      %p59 = scmp.eq.s32.totalorder %s19, 0
      %p60 = por %p58, %p59
      %p61 = scmp.ne.s32.totalorder %s53, %s55
      %p62 = scmp.eq.s32.totalorder %s24, 1
      %p63 = por %p61, %p62
      %p64 = scmp.ne.s32.totalorder %s55, %s56
      %p65 = scmp.eq.s32.totalorder %s24, 0
      %p66 = por %p64, %p65
      %p67 = scmp.ne.s32.totalorder %s55, %s56
      %p68 = scmp.eq.s32.totalorder %s25, 1
      %p69 = por %p67, %p68
      %p71 = scmp.ne.s32.totalorder %s56, %s70
      %p72 = scmp.eq.s32.totalorder %s25, 0
      %p73 = por %p71, %p72
      %s75 = sadd.s32 %s74, 1
      %p78 = scmp.eq.s32.totalorder %s19, 1
      %p79 = scmp.ne.s32.totalorder %s74, %s76
      %p80 = scmp.eq.s32.totalorder %s19, 0
      %p81 = por %p79, %p80
      %p82 = scmp.ne.s32.totalorder %s74, %s76
      %p83 = scmp.eq.s32.totalorder %s24, 1
      %p84 = por %p82, %p83
      %p85 = scmp.ne.s32.totalorder %s76, %s77
      %p86 = scmp.eq.s32.totalorder %s24, 0
      %p87 = por %p85, %p86
      %p88 = scmp.ne.s32.totalorder %s76, %s77
      %p89 = scmp.eq.s32.totalorder %s25, 1
      %p90 = por %p88, %p89
      %p92 = scmp.ne.s32.totalorder %s77, %s91
      %p93 = scmp.eq.s32.totalorder %s25, 0
      %p94 = por %p92, %p93
      %s96 = sadd.s32 %s95, 1
      %p99 = scmp.eq.s32.totalorder %s19, 1
      %p100 = scmp.ne.s32.totalorder %s95, %s97
      %p101 = scmp.eq.s32.totalorder %s19, 0
      %p102 = por %p100, %p101
      %p103 = scmp.ne.s32.totalorder %s95, %s97
      %p104 = scmp.eq.s32.totalorder %s24, 1
      %p105 = por %p103, %p104
      %p106 = scmp.ne.s32.totalorder %s97, %s98
      %p107 = scmp.eq.s32.totalorder %s24, 0
      %p108 = por %p106, %p107
      %p109 = scmp.ne.s32.totalorder %s97, %s98
      %p110 = scmp.eq.s32.totalorder %s25, 1
      %p111 = por %p109, %p110
      %p113 = scmp.ne.s32.totalorder %s98, %s112
      %p114 = scmp.eq.s32.totalorder %s25, 0
      %p115 = por %p113, %p114
      %s117 = sadd.s32 %s116, 1
      %p120 = scmp.eq.s32.totalorder %s19, 1
      %p121 = scmp.ne.s32.totalorder %s116, %s118
      %p122 = scmp.eq.s32.totalorder %s19, 0
      %p123 = por %p121, %p122
      %p124 = scmp.ne.s32.totalorder %s116, %s118
      %p125 = scmp.eq.s32.totalorder %s24, 1
      %p126 = por %p124, %p125
      %p127 = scmp.ne.s32.totalorder %s118, %s119
      %p128 = scmp.eq.s32.totalorder %s24, 0
      %p129 = por %p127, %p128
      %p130 = scmp.ne.s32.totalorder %s118, %s119
      %p131 = scmp.eq.s32.totalorder %s25, 1
      %p132 = por %p130, %p131
      %p134 = scmp.ne.s32.totalorder %s119, %s133
      %p135 = scmp.eq.s32.totalorder %s25, 0
      %p136 = por %p134, %p135
      %s138 = sadd.s32 %s137, 1
      %p141 = scmp.eq.s32.totalorder %s19, 1
      %p142 = scmp.ne.s32.totalorder %s137, %s139
      %p143 = scmp.eq.s32.totalorder %s19, 0
      %p144 = por %p142, %p143
      %p145 = scmp.ne.s32.totalorder %s137, %s139
      %p146 = scmp.eq.s32.totalorder %s24, 1
      %p147 = por %p145, %p146
      %p148 = scmp.ne.s32.totalorder %s139, %s140
      %p149 = scmp.eq.s32.totalorder %s24, 0
      %p150 = por %p148, %p149
      %p151 = scmp.ne.s32.totalorder %s139, %s140
      %p152 = scmp.eq.s32.totalorder %s25, 1
      %p153 = por %p151, %p152
      %p155 = scmp.ne.s32.totalorder %s140, %s154
      %p156 = scmp.eq.s32.totalorder %s25, 0
      %p157 = por %p155, %p156
      %s158 = ssub.s32 %s19, %s26
      %p159 = scmp.eq.s32.totalorder %s158, 0
      %s161 = sadd.s32 %s160, 1
      %s162 = scalar_select %p159, %s160, %s161
      %p165 = pneg %p159
      %p166 = scmp.eq.s32.totalorder %s19, 1
      %p167 = por %p165, %p166
      %p168 = scmp.ne.s32.totalorder %s160, %s163
      %p169 = scmp.eq.s32.totalorder %s19, 0
      %p170 = por %p168, %p169
      %p171 = scmp.ne.s32.totalorder %s160, %s163
      %p172 = scmp.eq.s32.totalorder %s24, 1
      %p173 = por %p171, %p172
      %p174 = scmp.ne.s32.totalorder %s163, %s164
      %p175 = scmp.eq.s32.totalorder %s24, 0
      %p176 = por %p174, %p175
      %p177 = scmp.ne.s32.totalorder %s163, %s164
      %p178 = scmp.eq.s32.totalorder %s25, 1
      %p179 = por %p177, %p178
      %p181 = scmp.ne.s32.totalorder %s164, %s180
      %p182 = scmp.eq.s32.totalorder %s25, 0
      %p183 = por %p181, %p182
      %p184 = scmp.le.s32.totalorder 1, %s19
      %p185 = scmp.lt.s32.totalorder %s19, 3
      %p186 = pnand %p184, %p185
      %p187 = pneg %p186
      // Predicated region
      $region9: #{tpu_custom_call.1} parent=5 // pred_check
        _
      $region10: #{tpu_custom_call.1} parent=5 // pred_check_branch
        %189 = sbr.rel (%p186) target = $region12
      $region11: #{tpu_custom_call.1} parent=5 // pred_region
        %s190 = ssub.s32 %s19, 1
        // Predicated region
        $region13: #{tpu_custom_call.1} parent=11 // pred_check
          %p191 = pneg %p66
        $region14: #{tpu_custom_call.1} parent=11 // pred_check_branch
          %193 = sbr.rel (%p191) target = $region16
        $region15: #{tpu_custom_call.1} parent=11 // pred_region
          _
        $region16: #{tpu_custom_call.1} parent=11 // pred_fallthru
          _
        // Predicated region
        $region17: #{tpu_custom_call.1} parent=11 // pred_check
          %p194 = pneg %p87
        $region18: #{tpu_custom_call.1} parent=11 // pred_check_branch
          %196 = sbr.rel (%p194) target = $region20
        $region19: #{tpu_custom_call.1} parent=11 // pred_region
          %s198 = ssub.s32 2048, 2048
          %199 = vsyncadd [#allocation6], %s198
          %s200 = sshll.u32 [#allocation5], 4
          %s201 = int_to_ptr.vmem [resolvable:$true] %s200
          %206 = dma.hbm_to_vmem [thread:$0]  %s2, 2048, %s201, [#allocation6], 64, 64, 4
        $region20: #{tpu_custom_call.1} parent=11 // pred_fallthru
          _
        // Predicated region
        $region21: #{tpu_custom_call.1} parent=11 // pred_check
          %p207 = pneg %p108
        $region22: #{tpu_custom_call.1} parent=11 // pred_check_branch
          %209 = sbr.rel (%p207) target = $region24
        $region23: #{tpu_custom_call.1} parent=11 // pred_region
          %s211 = ssub.s32 1024, 1024
          %212 = vsyncadd [#allocation6], %s211
          %s213 = sshll.u32 [#allocation7], 4
          %s214 = int_to_ptr.vmem [resolvable:$true] %s213
          %219 = dma.hbm_to_vmem [thread:$0]  %s3, 1024, %s214, [#allocation6], 64, 64, 4
        $region24: #{tpu_custom_call.1} parent=11 // pred_fallthru
          _
        // Predicated region
        $region25: #{tpu_custom_call.1} parent=11 // pred_check
          %p220 = pneg %p129
        $region26: #{tpu_custom_call.1} parent=11 // pred_check_branch
          %222 = sbr.rel (%p220) target = $region28
        $region27: #{tpu_custom_call.1} parent=11 // pred_region
          _
        $region28: #{tpu_custom_call.1} parent=11 // pred_fallthru
          _
        // Predicated region
        $region29: #{tpu_custom_call.1} parent=11 // pred_check
          %p223 = pneg %p150
        $region30: #{tpu_custom_call.1} parent=11 // pred_check_branch
          %225 = sbr.rel (%p223) target = $region32
        $region31: #{tpu_custom_call.1} parent=11 // pred_region
          _
        $region32: #{tpu_custom_call.1} parent=11 // pred_fallthru
          _
      $region12: #{tpu_custom_call.1} parent=5 // pred_fallthru
        _
      %p226 = scmp.lt.s32.totalorder %s19, 2
      // Predicated region
      $region33: #{tpu_custom_call.1} parent=5 // pred_check
        %p227 = pneg %p226
      $region34: #{tpu_custom_call.1} parent=5 // pred_check_branch
        %229 = sbr.rel (%p227) target = $region36
      $region35: #{tpu_custom_call.1} parent=5 // pred_region
        // Predicated region
        $region37: #{tpu_custom_call.1} parent=35 // pred_check
          %p230 = pneg %p39
        $region38: #{tpu_custom_call.1} parent=35 // pred_check_branch
          %232 = sbr.rel (%p230) target = $region40
        $region39: #{tpu_custom_call.1} parent=35 // pred_region
          %s233 = sand.u32 %s29, 1
          %s234 = scalar_lea.sflag [#allocation3], %s233
          %s235 = sand.u32 %s29, 1
          %s236 = smul.addr %s235, 2
          %s237 = scalar_lea.vmem [#allocation2], %s236
          %s239 = ssub.s32 32, 32
          %240 = vsyncadd %s234, %s239
          %s241 = smul.addr %s19, 32
          %s242 = scalar_lea.hbm %s0, %s241
          %s244 = sshll.u32 %s237, 4
          %s245 = int_to_ptr.vmem [resolvable:$true] %s244
          %247 = dma.hbm_to_vmem [thread:$0]  %s242, 32, %s245, %s234
        $region40: #{tpu_custom_call.1} parent=35 // pred_fallthru
          _
      $region36: #{tpu_custom_call.1} parent=5 // pred_fallthru
        _
      %p248 = scmp.le.s32.totalorder 1, %s19
      %p249 = scmp.lt.s32.totalorder %s19, 3
      %p250 = pnand %p248, %p249
      %p251 = pneg %p250
      // Predicated region
      $region41: #{tpu_custom_call.1} parent=5 // pred_check
        _
      $region42: #{tpu_custom_call.1} parent=5 // pred_check_branch
        %253 = sbr.rel (%p250) target = $region44
      $region43: #{tpu_custom_call.1} parent=5 // pred_region
        %s254 = ssub.s32 %s19, 1
        %s255 = sand.u32 %s32, 1
        %s256 = scalar_lea.sflag [#allocation3], %s255
        %s257 = sand.u32 %s32, 1
        %s258 = smul.addr %s257, 2
        %s259 = scalar_lea.vmem [#allocation2], %s258
        // Predicated region
        $region45: #{tpu_custom_call.1} parent=43 // pred_check
          %p260 = pneg %p45
        $region46: #{tpu_custom_call.1} parent=43 // pred_check_branch
          %262 = sbr.rel (%p260) target = $region48
        $region47: #{tpu_custom_call.1} parent=43 // pred_region
          %263 = dma.done %s256, 32
        $region48: #{tpu_custom_call.1} parent=43 // pred_fallthru
          _
        // Predicated region
        $region49: #{tpu_custom_call.1} parent=43 // pred_check
          %p264 = pneg %p87
        $region50: #{tpu_custom_call.1} parent=43 // pred_check_branch
          %266 = sbr.rel (%p264) target = $region52
        $region51: #{tpu_custom_call.1} parent=43 // pred_region
          %267 = dma.done [#allocation6], 2048
        $region52: #{tpu_custom_call.1} parent=43 // pred_fallthru
          _
        // Predicated region
        $region53: #{tpu_custom_call.1} parent=43 // pred_check
          %p268 = pneg %p108
        $region54: #{tpu_custom_call.1} parent=43 // pred_check_branch
          %270 = sbr.rel (%p268) target = $region56
        $region55: #{tpu_custom_call.1} parent=43 // pred_region
          %271 = dma.done [#allocation6], 1024
        $region56: #{tpu_custom_call.1} parent=43 // pred_fallthru
          _
        %s272 = sand.u32 %s32, 1
        %s273 = scalar_lea.sflag [#allocation3], %s272
        %s274 = sand.u32 %s32, 1
        %s275 = smul.addr %s274, 2
        %s276 = scalar_lea.vmem [#allocation2], %s275
        %p277 = pneg %p45
        %p278 = pneg %p42
        %p279 = pneg %p66
        %p280 = pneg %p63
        %p281 = pneg %p87
        %p282 = pneg %p84
        %p283 = pneg %p108
        %p284 = pneg %p105
        %p285 = pneg %p129
        %p286 = pneg %p126
        %p287 = pneg %p150
        %p288 = pneg %p147
        %p289 = pneg %p176
        %p290 = pneg %p173
        %s291 = sand.u32 %s163, 1
        %s292 = scalar_lea.sflag [#allocation4], %s291
        %s293 = sand.u32 %s163, 1
        %s294 = scalar_lea.vmem [#allocation8], %s293
        %v296 = vld [vmem:[%s259] sm:$0x1]
        %v297 = vld [vmem:[%s259 + $0x1] sm:$0x1]
        %v298 = vlaneseq
        %v299 = vshrl.u32 %v298, 7
        %v300 = vadd.s32 %v299, 8
        %v301 = vadd.s32 %v299, 16
        %v302 = vadd.s32 %v299, 24
        %v303 = vadd.s32 %v299, 32
        %v304 = vadd.s32 %v299, 40
        %v305 = vadd.s32 %v299, 48
        %v306 = vadd.s32 %v299, 56
        %v307 = vadd.s32 %v299, 64
        %v308 = vadd.s32 %v299, 72
        %v309 = vadd.s32 %v299, 80
        %v310 = vadd.s32 %v299, 88
        %v311 = vadd.s32 %v299, 96
        %v312 = vadd.s32 %v299, 104
        %v313 = vadd.s32 %v299, 112
        %v314 = vadd.s32 %v299, 120
        %v315 = vlaneseq
        %v316 = vshrl.u32 %v315, 7
        %v317 = vsub.s32 0, %v316
        %v318 = vrot.slane %v296, %v317
        %vm319 = vcmp.eq.s32.totalorder %v299, %v318
        %vm320 = vcmp.eq.s32.totalorder %v300, %v318
        %vm321 = vcmp.eq.s32.totalorder %v301, %v318
        %vm322 = vcmp.eq.s32.totalorder %v302, %v318
        %vm323 = vcmp.eq.s32.totalorder %v303, %v318
        %vm324 = vcmp.eq.s32.totalorder %v304, %v318
        %vm325 = vcmp.eq.s32.totalorder %v305, %v318
        %vm326 = vcmp.eq.s32.totalorder %v306, %v318
        %vm327 = vcmp.eq.s32.totalorder %v307, %v318
        %vm328 = vcmp.eq.s32.totalorder %v308, %v318
        %vm329 = vcmp.eq.s32.totalorder %v309, %v318
        %vm330 = vcmp.eq.s32.totalorder %v310, %v318
        %vm331 = vcmp.eq.s32.totalorder %v311, %v318
        %vm332 = vcmp.eq.s32.totalorder %v312, %v318
        %vm333 = vcmp.eq.s32.totalorder %v313, %v318
        %vm334 = vcmp.eq.s32.totalorder %v314, %v318
        %v335 = vsel %vm319, 1, 0
        %v336 = vsel %vm320, 1, 0
        %v337 = vsel %vm321, 1, 0
        %v338 = vsel %vm322, 1, 0
        %v339 = vsel %vm323, 1, 0
        %v340 = vsel %vm324, 1, 0
        %v341 = vsel %vm325, 1, 0
        %v342 = vsel %vm326, 1, 0
        %v343 = vsel %vm327, 1, 0
        %v344 = vsel %vm328, 1, 0
        %v345 = vsel %vm329, 1, 0
        %v346 = vsel %vm330, 1, 0
        %v347 = vsel %vm331, 1, 0
        %v348 = vsel %vm332, 1, 0
        %v349 = vsel %vm333, 1, 0
        %v350 = vsel %vm334, 1, 0
        %v351 = vcvt.s32.f32 %v335
        %v352 = vcvt.s32.f32 %v336
        %v353 = vcvt.s32.f32 %v337
        %v354 = vcvt.s32.f32 %v338
        %v355 = vcvt.s32.f32 %v339
        %v356 = vcvt.s32.f32 %v340
        %v357 = vcvt.s32.f32 %v341
        %v358 = vcvt.s32.f32 %v342
        %v359 = vcvt.s32.f32 %v343
        %v360 = vcvt.s32.f32 %v344
        %v361 = vcvt.s32.f32 %v345
        %v362 = vcvt.s32.f32 %v346
        %v363 = vcvt.s32.f32 %v347
        %v364 = vcvt.s32.f32 %v348
        %v365 = vcvt.s32.f32 %v349
        %v366 = vcvt.s32.f32 %v350
        %v367 = vpack.c.bf16 %v352, %v351
        %v368 = vpack.c.bf16 %v354, %v353
        %v369 = vpack.c.bf16 %v356, %v355
        %v370 = vpack.c.bf16 %v358, %v357
        %v371 = vpack.c.bf16 %v360, %v359
        %v372 = vpack.c.bf16 %v362, %v361
        %v373 = vpack.c.bf16 %v364, %v363
        %v374 = vpack.c.bf16 %v366, %v365
        %v375 = vlaneseq
        %v376 = vshrl.u32 %v375, 7
        %v377 = vsub.s32 0, %v376
        %v378 = vrot.slane %v297, %v377
        %vm379 = vcmp.eq.s32.totalorder %v299, %v378
        %vm380 = vcmp.eq.s32.totalorder %v300, %v378
        %vm381 = vcmp.eq.s32.totalorder %v301, %v378
        %vm382 = vcmp.eq.s32.totalorder %v302, %v378
        %vm383 = vcmp.eq.s32.totalorder %v303, %v378
        %vm384 = vcmp.eq.s32.totalorder %v304, %v378
        %vm385 = vcmp.eq.s32.totalorder %v305, %v378
        %vm386 = vcmp.eq.s32.totalorder %v306, %v378
        %vm387 = vcmp.eq.s32.totalorder %v307, %v378
        %vm388 = vcmp.eq.s32.totalorder %v308, %v378
        %vm389 = vcmp.eq.s32.totalorder %v309, %v378
        %vm390 = vcmp.eq.s32.totalorder %v310, %v378
        %vm391 = vcmp.eq.s32.totalorder %v311, %v378
        %vm392 = vcmp.eq.s32.totalorder %v312, %v378
        %vm393 = vcmp.eq.s32.totalorder %v313, %v378
        %vm394 = vcmp.eq.s32.totalorder %v314, %v378
        %v395 = vsel %vm379, 1, 0
        %v396 = vsel %vm380, 1, 0
        %v397 = vsel %vm381, 1, 0
        %v398 = vsel %vm382, 1, 0
        %v399 = vsel %vm383, 1, 0
        %v400 = vsel %vm384, 1, 0
        %v401 = vsel %vm385, 1, 0
        %v402 = vsel %vm386, 1, 0
        %v403 = vsel %vm387, 1, 0
        %v404 = vsel %vm388, 1, 0
        %v405 = vsel %vm389, 1, 0
        %v406 = vsel %vm390, 1, 0
        %v407 = vsel %vm391, 1, 0
        %v408 = vsel %vm392, 1, 0
        %v409 = vsel %vm393, 1, 0
        %v410 = vsel %vm394, 1, 0
        %v411 = vcvt.s32.f32 %v395
        %v412 = vcvt.s32.f32 %v396
        %v413 = vcvt.s32.f32 %v397
        %v414 = vcvt.s32.f32 %v398
        %v415 = vcvt.s32.f32 %v399
        %v416 = vcvt.s32.f32 %v400
        %v417 = vcvt.s32.f32 %v401
        %v418 = vcvt.s32.f32 %v402
        %v419 = vcvt.s32.f32 %v403
        %v420 = vcvt.s32.f32 %v404
        %v421 = vcvt.s32.f32 %v405
        %v422 = vcvt.s32.f32 %v406
        %v423 = vcvt.s32.f32 %v407
        %v424 = vcvt.s32.f32 %v408
        %v425 = vcvt.s32.f32 %v409
        %v426 = vcvt.s32.f32 %v410
        %v427 = vpack.c.bf16 %v412, %v411
        %v428 = vpack.c.bf16 %v414, %v413
        %v429 = vpack.c.bf16 %v416, %v415
        %v430 = vpack.c.bf16 %v418, %v417
        %v431 = vpack.c.bf16 %v420, %v419
        %v432 = vpack.c.bf16 %v422, %v421
        %v433 = vpack.c.bf16 %v424, %v423
        %v434 = vpack.c.bf16 %v426, %v425
        %v435 = vld [vmem:[%s1] sm:$0xf]
        %v436 = vld [vmem:[%s1 + $0x4] sm:$0xf]
        %v437 = vld [vmem:[%s1 + $0x8] sm:$0xf]
        %v438 = vld [vmem:[%s1 + $0xc] sm:$0xf]
        %v439 = vld [vmem:[%s1 + $0x10] sm:$0xf]
        %v440 = vld [vmem:[%s1 + $0x14] sm:$0xf]
        %v441 = vld [vmem:[%s1 + $0x18] sm:$0xf]
        %v442 = vld [vmem:[%s1 + $0x1c] sm:$0xf]
        %v443 = vld [vmem:[%s1 + $0x20] sm:$0xf]
        %v444 = vld [vmem:[%s1 + $0x24] sm:$0xf]
        %v445 = vld [vmem:[%s1 + $0x28] sm:$0xf]
        %v446 = vld [vmem:[%s1 + $0x2c] sm:$0xf]
        %v447 = vld [vmem:[%s1 + $0x30] sm:$0xf]
        %v448 = vld [vmem:[%s1 + $0x34] sm:$0xf]
        %v449 = vld [vmem:[%s1 + $0x38] sm:$0xf]
        %v450 = vld [vmem:[%s1 + $0x3c] sm:$0xf]
        %v451 = vld [vmem:[%s1 + $0x40] sm:$0xf]
        %v452 = vld [vmem:[%s1 + $0x44] sm:$0xf]
        %v453 = vld [vmem:[%s1 + $0x48] sm:$0xf]
        %v454 = vld [vmem:[%s1 + $0x4c] sm:$0xf]
        %v455 = vld [vmem:[%s1 + $0x50] sm:$0xf]
        %v456 = vld [vmem:[%s1 + $0x54] sm:$0xf]
        %v457 = vld [vmem:[%s1 + $0x58] sm:$0xf]
        %v458 = vld [vmem:[%s1 + $0x5c] sm:$0xf]
        %v459 = vld [vmem:[%s1 + $0x60] sm:$0xf]
        %v460 = vld [vmem:[%s1 + $0x64] sm:$0xf]
        %v461 = vld [vmem:[%s1 + $0x68] sm:$0xf]
        %v462 = vld [vmem:[%s1 + $0x6c] sm:$0xf]
        %v463 = vld [vmem:[%s1 + $0x70] sm:$0xf]
        %v464 = vld [vmem:[%s1 + $0x74] sm:$0xf]
        %v465 = vld [vmem:[%s1 + $0x78] sm:$0xf]
        %v466 = vld [vmem:[%s1 + $0x7c] sm:$0xf]
        %v499 = vunpack.c.l.b16 %v435
        %v500 = vunpack.c.l.b16 %v436
        %v501 = vunpack.c.l.b16 %v437
        %v502 = vunpack.c.l.b16 %v438
        %v503 = vunpack.c.l.b16 %v439
        %v504 = vunpack.c.l.b16 %v440
        %v505 = vunpack.c.l.b16 %v441
        %v506 = vunpack.c.l.b16 %v442
        %v507 = vunpack.c.l.b16 %v443
        %v508 = vunpack.c.l.b16 %v444
        %v509 = vunpack.c.l.b16 %v445
        %v510 = vunpack.c.l.b16 %v446
        %v511 = vunpack.c.l.b16 %v447
        %v512 = vunpack.c.l.b16 %v448
        %v513 = vunpack.c.l.b16 %v449
        %v514 = vunpack.c.l.b16 %v450
        %v515 = vunpack.c.l.b16 %v451
        %v516 = vunpack.c.l.b16 %v452
        %v517 = vunpack.c.l.b16 %v453
        %v518 = vunpack.c.l.b16 %v454
        %v519 = vunpack.c.l.b16 %v455
        %v520 = vunpack.c.l.b16 %v456
        %v521 = vunpack.c.l.b16 %v457
        %v522 = vunpack.c.l.b16 %v458
        %v523 = vunpack.c.l.b16 %v459
        %v524 = vunpack.c.l.b16 %v460
        %v525 = vunpack.c.l.b16 %v461
        %v526 = vunpack.c.l.b16 %v462
        %v527 = vunpack.c.l.b16 %v463
        %v528 = vunpack.c.l.b16 %v464
        %v529 = vunpack.c.l.b16 %v465
        %v530 = vunpack.c.l.b16 %v466
        %v531 = vpack.c.b16 %v500, %v499
        %v532 = vpack.c.b16 %v502, %v501
        %v533 = vpack.c.b16 %v504, %v503
        %v534 = vpack.c.b16 %v506, %v505
        %v535 = vpack.c.b16 %v508, %v507
        %v536 = vpack.c.b16 %v510, %v509
        %v537 = vpack.c.b16 %v512, %v511
        %v538 = vpack.c.b16 %v514, %v513
        %v539 = vpack.c.b16 %v516, %v515
        %v540 = vpack.c.b16 %v518, %v517
        %v541 = vpack.c.b16 %v520, %v519
        %v542 = vpack.c.b16 %v522, %v521
        %v543 = vpack.c.b16 %v524, %v523
        %v544 = vpack.c.b16 %v526, %v525
        %v545 = vpack.c.b16 %v528, %v527
        %v546 = vpack.c.b16 %v530, %v529
        %563 = vmatprep.subr.bf16.mxu0 0
        %564 = vmatpush1.bf16.msra.mxu0 %v367
        %565 = vmatprep.subr.bf16.mxu0 0
        %566 = vmatpush1.bf16.msra.mxu0 %v368
        %567 = vmatprep.subr.bf16.mxu0 0
        %568 = vmatpush1.bf16.msra.mxu0 %v369
        %569 = vmatprep.subr.bf16.mxu0 0
        %570 = vmatpush1.bf16.msra.mxu0 %v370
        %571 = vmatprep.subr.bf16.mxu0 0
        %572 = vmatpush1.bf16.msra.mxu0 %v371
        %573 = vmatprep.subr.bf16.mxu0 0
        %574 = vmatpush1.bf16.msra.mxu0 %v372
        %575 = vmatprep.subr.bf16.mxu0 0
        %576 = vmatpush1.bf16.msra.mxu0 %v373
        %577 = vmatprep.subr.bf16.mxu0 0
        %578 = vmatpush1.bf16.msra.mxu0 %v374
        %579 = vmatprep.subr.bf16.mxu0 0
        %580 = vmatpush1.bf16.msra.mxu0 0
        %581 = vmatprep.subr.bf16.mxu0 0
        %582 = vmatpush1.bf16.msra.mxu0 0
        %583 = vmatprep.subr.bf16.mxu0 0
        %584 = vmatpush1.bf16.msra.mxu0 0
        %585 = vmatprep.subr.bf16.mxu0 0
        %586 = vmatpush1.bf16.msra.mxu0 0
        %587 = vmatprep.subr.bf16.mxu0 0
        %588 = vmatpush1.bf16.msra.mxu0 0
        %589 = vmatprep.subr.bf16.mxu0 0
        %590 = vmatpush1.bf16.msra.mxu0 0
        %591 = vmatprep.subr.bf16.mxu0 0
        %592 = vmatpush1.bf16.msra.mxu0 0
        %593 = vmatprep.subr.bf16.mxu0 0
        %594 = vmatpush1.bf16.msra.mxu0 0
        %595 = vmatprep.mubr.bf16.mxu0 0
        %596 = vmatmul.mubr.bf16.gmra.mrb[0].mxu0 %v531
        %v597 = vpop.f32.mrb[0].mxu0
        %v598 = vadd.f32 0.0, %v597
        %v599 = vpop.f32.mrb[0].mxu0
        %v600 = vpop.f32.mrb[0].mxu0
        %v601 = vadd.f32 0.0, %v600
        %v602 = vpop.f32.mrb[0].mxu0
        %603 = vmatprep.mubr.bf16.mxu0 0
        %604 = vmatmul.mubr.bf16.gmra.mrb[0].mxu0 %v532
        %v605 = vpop.f32.mrb[0].mxu0
        %v606 = vadd.f32 0.0, %v605
        %v607 = vpop.f32.mrb[0].mxu0
        %v608 = vpop.f32.mrb[0].mxu0
        %v609 = vadd.f32 0.0, %v608
        %v610 = vpop.f32.mrb[0].mxu0
        %611 = vmatprep.mubr.bf16.mxu0 0
        %612 = vmatmul.mubr.bf16.gmra.mrb[0].mxu0 %v533
        %v613 = vpop.f32.mrb[0].mxu0
        %v614 = vadd.f32 0.0, %v613
        %v615 = vpop.f32.mrb[0].mxu0
        %v616 = vpop.f32.mrb[0].mxu0
        %v617 = vadd.f32 0.0, %v616
        %v618 = vpop.f32.mrb[0].mxu0
        %619 = vmatprep.mubr.bf16.mxu0 0
        %620 = vmatmul.mubr.bf16.gmra.mrb[0].mxu0 %v534
        %v621 = vpop.f32.mrb[0].mxu0
        %v622 = vadd.f32 0.0, %v621
        %v623 = vpop.f32.mrb[0].mxu0
        %v624 = vpop.f32.mrb[0].mxu0
        %v625 = vadd.f32 0.0, %v624
        %v626 = vpop.f32.mrb[0].mxu0
        %627 = vmatprep.mubr.bf16.mxu0 0
        %628 = vmatmul.mubr.bf16.gmra.mrb[0].mxu0 %v535
        %v629 = vpop.f32.mrb[0].mxu0
        %v630 = vadd.f32 0.0, %v629
        %v631 = vpop.f32.mrb[0].mxu0
        %v632 = vpop.f32.mrb[0].mxu0
        %v633 = vadd.f32 0.0, %v632
        %v634 = vpop.f32.mrb[0].mxu0
        %635 = vmatprep.mubr.bf16.mxu0 0
        %636 = vmatmul.mubr.bf16.gmra.mrb[0].mxu0 %v536
        %v637 = vpop.f32.mrb[0].mxu0
        %v638 = vadd.f32 0.0, %v637
        %v639 = vpop.f32.mrb[0].mxu0
        %v640 = vpop.f32.mrb[0].mxu0
        %v641 = vadd.f32 0.0, %v640
        %v642 = vpop.f32.mrb[0].mxu0
        %643 = vmatprep.mubr.bf16.mxu0 0
        %644 = vmatmul.mubr.bf16.gmra.mrb[0].mxu0 %v537
        %v645 = vpop.f32.mrb[0].mxu0
        %v646 = vadd.f32 0.0, %v645
        %v647 = vpop.f32.mrb[0].mxu0
        %v648 = vpop.f32.mrb[0].mxu0
        %v649 = vadd.f32 0.0, %v648
        %v650 = vpop.f32.mrb[0].mxu0
        %651 = vmatprep.mubr.bf16.mxu0 0
        %652 = vmatmul.mubr.bf16.gmra.mrb[0].mxu0 %v538
        %v653 = vpop.f32.mrb[0].mxu0
        %v654 = vadd.f32 0.0, %v653
        %v655 = vpop.f32.mrb[0].mxu0
        %v656 = vpop.f32.mrb[0].mxu0
        %v657 = vadd.f32 0.0, %v656
        %v658 = vpop.f32.mrb[0].mxu0
        %659 = vmatprep.mubr.bf16.mxu0 0
        %660 = vmatmul.mubr.bf16.gmra.mrb[0].mxu0 %v539
        %v661 = vpop.f32.mrb[0].mxu0
        %v662 = vadd.f32 0.0, %v661
        %v663 = vpop.f32.mrb[0].mxu0
        %v664 = vpop.f32.mrb[0].mxu0
        %v665 = vadd.f32 0.0, %v664
        %v666 = vpop.f32.mrb[0].mxu0
        %667 = vmatprep.mubr.bf16.mxu0 0
        %668 = vmatmul.mubr.bf16.gmra.mrb[0].mxu0 %v540
        %v669 = vpop.f32.mrb[0].mxu0
        %v670 = vadd.f32 0.0, %v669
        %v671 = vpop.f32.mrb[0].mxu0
        %v672 = vpop.f32.mrb[0].mxu0
        %v673 = vadd.f32 0.0, %v672
        %v674 = vpop.f32.mrb[0].mxu0
        %675 = vmatprep.mubr.bf16.mxu0 0
        %676 = vmatmul.mubr.bf16.gmra.mrb[0].mxu0 %v541
        %v677 = vpop.f32.mrb[0].mxu0
        %v678 = vadd.f32 0.0, %v677
        %v679 = vpop.f32.mrb[0].mxu0
        %v680 = vpop.f32.mrb[0].mxu0
        %v681 = vadd.f32 0.0, %v680
        %v682 = vpop.f32.mrb[0].mxu0
        %683 = vmatprep.mubr.bf16.mxu0 0
        %684 = vmatmul.mubr.bf16.gmra.mrb[0].mxu0 %v542
        %v685 = vpop.f32.mrb[0].mxu0
        %v686 = vadd.f32 0.0, %v685
        %v687 = vpop.f32.mrb[0].mxu0
        %v688 = vpop.f32.mrb[0].mxu0
        %v689 = vadd.f32 0.0, %v688
        %v690 = vpop.f32.mrb[0].mxu0
        %691 = vmatprep.mubr.bf16.mxu0 0
        %692 = vmatmul.mubr.bf16.gmra.mrb[0].mxu0 %v543
        %v693 = vpop.f32.mrb[0].mxu0
        %v694 = vadd.f32 0.0, %v693
        %v695 = vpop.f32.mrb[0].mxu0
        %v696 = vpop.f32.mrb[0].mxu0
        %v697 = vadd.f32 0.0, %v696
        %v698 = vpop.f32.mrb[0].mxu0
        %699 = vmatprep.mubr.bf16.mxu0 0
        %700 = vmatmul.mubr.bf16.gmra.mrb[0].mxu0 %v544
        %v701 = vpop.f32.mrb[0].mxu0
        %v702 = vadd.f32 0.0, %v701
        %v703 = vpop.f32.mrb[0].mxu0
        %v704 = vpop.f32.mrb[0].mxu0
        %v705 = vadd.f32 0.0, %v704
        %v706 = vpop.f32.mrb[0].mxu0
        %707 = vmatprep.mubr.bf16.mxu0 0
        %708 = vmatmul.mubr.bf16.gmra.mrb[0].mxu0 %v545
        %v709 = vpop.f32.mrb[0].mxu0
        %v710 = vadd.f32 0.0, %v709
        %v711 = vpop.f32.mrb[0].mxu0
        %v712 = vpop.f32.mrb[0].mxu0
        %v713 = vadd.f32 0.0, %v712
        %v714 = vpop.f32.mrb[0].mxu0
        %715 = vmatprep.mubr.bf16.mxu0 0
        %716 = vmatmul.mubr.bf16.gmra.mrb[0].mxu0 %v546
        %v717 = vpop.f32.mrb[0].mxu0
        %v718 = vadd.f32 0.0, %v717
        %v719 = vpop.f32.mrb[0].mxu0
        %v720 = vpop.f32.mrb[0].mxu0
        %v721 = vadd.f32 0.0, %v720
        %v722 = vpop.f32.mrb[0].mxu0
        %723 = vdwg.mxu0
        %v724 = vld [vmem:[#allocation5] sm:$0xf]
        %v725 = vld [vmem:[#allocation5 + $0x4] sm:$0xf]
        %v726 = vld [vmem:[#allocation5 + $0x8] sm:$0xf]
        %v727 = vld [vmem:[#allocation5 + $0xc] sm:$0xf]
        %v728 = vld [vmem:[#allocation5 + $0x10] sm:$0xf]
        %v729 = vld [vmem:[#allocation5 + $0x14] sm:$0xf]
        %v730 = vld [vmem:[#allocation5 + $0x18] sm:$0xf]
        %v731 = vld [vmem:[#allocation5 + $0x1c] sm:$0xf]
        %v732 = vld [vmem:[#allocation5 + $0x20] sm:$0xf]
        %v733 = vld [vmem:[#allocation5 + $0x24] sm:$0xf]
        %v734 = vld [vmem:[#allocation5 + $0x28] sm:$0xf]
        %v735 = vld [vmem:[#allocation5 + $0x2c] sm:$0xf]
        %v736 = vld [vmem:[#allocation5 + $0x30] sm:$0xf]
        %v737 = vld [vmem:[#allocation5 + $0x34] sm:$0xf]
        %v738 = vld [vmem:[#allocation5 + $0x38] sm:$0xf]
        %v739 = vld [vmem:[#allocation5 + $0x3c] sm:$0xf]
        %v740 = vld [vmem:[#allocation5 + $0x40] sm:$0xf]
        %v741 = vld [vmem:[#allocation5 + $0x44] sm:$0xf]
        %v742 = vld [vmem:[#allocation5 + $0x48] sm:$0xf]
        %v743 = vld [vmem:[#allocation5 + $0x4c] sm:$0xf]
        %v744 = vld [vmem:[#allocation5 + $0x50] sm:$0xf]
        %v745 = vld [vmem:[#allocation5 + $0x54] sm:$0xf]
        %v746 = vld [vmem:[#allocation5 + $0x58] sm:$0xf]
        %v747 = vld [vmem:[#allocation5 + $0x5c] sm:$0xf]
        %v748 = vld [vmem:[#allocation5 + $0x60] sm:$0xf]
        %v749 = vld [vmem:[#allocation5 + $0x64] sm:$0xf]
        %v750 = vld [vmem:[#allocation5 + $0x68] sm:$0xf]
        %v751 = vld [vmem:[#allocation5 + $0x6c] sm:$0xf]
        %v752 = vld [vmem:[#allocation5 + $0x70] sm:$0xf]
        %v753 = vld [vmem:[#allocation5 + $0x74] sm:$0xf]
        %v754 = vld [vmem:[#allocation5 + $0x78] sm:$0xf]
        %v755 = vld [vmem:[#allocation5 + $0x7c] sm:$0xf]
        %v788 = vunpack.c.l.b16 %v724
        %v789 = vunpack.c.l.b16 %v725
        %v790 = vunpack.c.l.b16 %v726
        %v791 = vunpack.c.l.b16 %v727
        %v792 = vunpack.c.l.b16 %v728
        %v793 = vunpack.c.l.b16 %v729
        %v794 = vunpack.c.l.b16 %v730
        %v795 = vunpack.c.l.b16 %v731
        %v796 = vunpack.c.l.b16 %v732
        %v797 = vunpack.c.l.b16 %v733
        %v798 = vunpack.c.l.b16 %v734
        %v799 = vunpack.c.l.b16 %v735
        %v800 = vunpack.c.l.b16 %v736
        %v801 = vunpack.c.l.b16 %v737
        %v802 = vunpack.c.l.b16 %v738
        %v803 = vunpack.c.l.b16 %v739
        %v804 = vunpack.c.l.b16 %v740
        %v805 = vunpack.c.l.b16 %v741
        %v806 = vunpack.c.l.b16 %v742
        %v807 = vunpack.c.l.b16 %v743
        %v808 = vunpack.c.l.b16 %v744
        %v809 = vunpack.c.l.b16 %v745
        %v810 = vunpack.c.l.b16 %v746
        %v811 = vunpack.c.l.b16 %v747
        %v812 = vunpack.c.l.b16 %v748
        %v813 = vunpack.c.l.b16 %v749
        %v814 = vunpack.c.l.b16 %v750
        %v815 = vunpack.c.l.b16 %v751
        %v816 = vunpack.c.l.b16 %v752
        %v817 = vunpack.c.l.b16 %v753
        %v818 = vunpack.c.l.b16 %v754
        %v819 = vunpack.c.l.b16 %v755
        %v820 = vpack.c.b16 %v789, %v788
        %v821 = vpack.c.b16 %v791, %v790
        %v822 = vpack.c.b16 %v793, %v792
        %v823 = vpack.c.b16 %v795, %v794
        %v824 = vpack.c.b16 %v797, %v796
        %v825 = vpack.c.b16 %v799, %v798
        %v826 = vpack.c.b16 %v801, %v800
        %v827 = vpack.c.b16 %v803, %v802
        %v828 = vpack.c.b16 %v805, %v804
        %v829 = vpack.c.b16 %v807, %v806
        %v830 = vpack.c.b16 %v809, %v808
        %v831 = vpack.c.b16 %v811, %v810
        %v832 = vpack.c.b16 %v813, %v812
        %v833 = vpack.c.b16 %v815, %v814
        %v834 = vpack.c.b16 %v817, %v816
        %v835 = vpack.c.b16 %v819, %v818
        %852 = vmatprep.subr.bf16.mxu0 0
        %853 = vmatpush1.bf16.msra.mxu0 %v427
        %854 = vmatprep.subr.bf16.mxu0 0
        %855 = vmatpush1.bf16.msra.mxu0 %v428
        %856 = vmatprep.subr.bf16.mxu0 0
        %857 = vmatpush1.bf16.msra.mxu0 %v429
        %858 = vmatprep.subr.bf16.mxu0 0
        %859 = vmatpush1.bf16.msra.mxu0 %v430
        %860 = vmatprep.subr.bf16.mxu0 0
        %861 = vmatpush1.bf16.msra.mxu0 %v431
        %862 = vmatprep.subr.bf16.mxu0 0
        %863 = vmatpush1.bf16.msra.mxu0 %v432
        %864 = vmatprep.subr.bf16.mxu0 0
        %865 = vmatpush1.bf16.msra.mxu0 %v433
        %866 = vmatprep.subr.bf16.mxu0 0
        %867 = vmatpush1.bf16.msra.mxu0 %v434
        %868 = vmatprep.subr.bf16.mxu0 0
        %869 = vmatpush1.bf16.msra.mxu0 0
        %870 = vmatprep.subr.bf16.mxu0 0
        %871 = vmatpush1.bf16.msra.mxu0 0
        %872 = vmatprep.subr.bf16.mxu0 0
        %873 = vmatpush1.bf16.msra.mxu0 0
        %874 = vmatprep.subr.bf16.mxu0 0
        %875 = vmatpush1.bf16.msra.mxu0 0
        %876 = vmatprep.subr.bf16.mxu0 0
        %877 = vmatpush1.bf16.msra.mxu0 0
        %878 = vmatprep.subr.bf16.mxu0 0
        %879 = vmatpush1.bf16.msra.mxu0 0
        %880 = vmatprep.subr.bf16.mxu0 0
        %881 = vmatpush1.bf16.msra.mxu0 0
        %882 = vmatprep.subr.bf16.mxu0 0
        %883 = vmatpush1.bf16.msra.mxu0 0
        %884 = vmatprep.mubr.bf16.mxu0 0
        %885 = vmatmul.mubr.bf16.gmra.mrb[0].mxu0 %v820
        %v886 = vpop.f32.mrb[0].mxu0
        %v887 = vadd.f32 0.0, %v886
        %v888 = vpop.f32.mrb[0].mxu0
        %v889 = vpop.f32.mrb[0].mxu0
        %v890 = vadd.f32 0.0, %v889
        %v891 = vpop.f32.mrb[0].mxu0
        %892 = vmatprep.mubr.bf16.mxu0 0
        %893 = vmatmul.mubr.bf16.gmra.mrb[0].mxu0 %v821
        %v894 = vpop.f32.mrb[0].mxu0
        %v895 = vadd.f32 0.0, %v894
        %v896 = vpop.f32.mrb[0].mxu0
        %v897 = vpop.f32.mrb[0].mxu0
        %v898 = vadd.f32 0.0, %v897
        %v899 = vpop.f32.mrb[0].mxu0
        %900 = vmatprep.mubr.bf16.mxu0 0
        %901 = vmatmul.mubr.bf16.gmra.mrb[0].mxu0 %v822
        %v902 = vpop.f32.mrb[0].mxu0
        %v903 = vadd.f32 0.0, %v902
        %v904 = vpop.f32.mrb[0].mxu0
        %v905 = vpop.f32.mrb[0].mxu0
        %v906 = vadd.f32 0.0, %v905
        %v907 = vpop.f32.mrb[0].mxu0
        %908 = vmatprep.mubr.bf16.mxu0 0
        %909 = vmatmul.mubr.bf16.gmra.mrb[0].mxu0 %v823
        %v910 = vpop.f32.mrb[0].mxu0
        %v911 = vadd.f32 0.0, %v910
        %v912 = vpop.f32.mrb[0].mxu0
        %v913 = vpop.f32.mrb[0].mxu0
        %v914 = vadd.f32 0.0, %v913
        %v915 = vpop.f32.mrb[0].mxu0
        %916 = vmatprep.mubr.bf16.mxu0 0
        %917 = vmatmul.mubr.bf16.gmra.mrb[0].mxu0 %v824
        %v918 = vpop.f32.mrb[0].mxu0
        %v919 = vadd.f32 0.0, %v918
        %v920 = vpop.f32.mrb[0].mxu0
        %v921 = vpop.f32.mrb[0].mxu0
        %v922 = vadd.f32 0.0, %v921
        %v923 = vpop.f32.mrb[0].mxu0
        %924 = vmatprep.mubr.bf16.mxu0 0
        %925 = vmatmul.mubr.bf16.gmra.mrb[0].mxu0 %v825
        %v926 = vpop.f32.mrb[0].mxu0
        %v927 = vadd.f32 0.0, %v926
        %v928 = vpop.f32.mrb[0].mxu0
        %v929 = vpop.f32.mrb[0].mxu0
        %v930 = vadd.f32 0.0, %v929
        %v931 = vpop.f32.mrb[0].mxu0
        %932 = vmatprep.mubr.bf16.mxu0 0
        %933 = vmatmul.mubr.bf16.gmra.mrb[0].mxu0 %v826
        %v934 = vpop.f32.mrb[0].mxu0
        %v935 = vadd.f32 0.0, %v934
        %v936 = vpop.f32.mrb[0].mxu0
        %v937 = vpop.f32.mrb[0].mxu0
        %v938 = vadd.f32 0.0, %v937
        %v939 = vpop.f32.mrb[0].mxu0
        %940 = vmatprep.mubr.bf16.mxu0 0
        %941 = vmatmul.mubr.bf16.gmra.mrb[0].mxu0 %v827
        %v942 = vpop.f32.mrb[0].mxu0
        %v943 = vadd.f32 0.0, %v942
        %v944 = vpop.f32.mrb[0].mxu0
        %v945 = vpop.f32.mrb[0].mxu0
        %v946 = vadd.f32 0.0, %v945
        %v947 = vpop.f32.mrb[0].mxu0
        %948 = vmatprep.mubr.bf16.mxu0 0
        %949 = vmatmul.mubr.bf16.gmra.mrb[0].mxu0 %v828
        %v950 = vpop.f32.mrb[0].mxu0
        %v951 = vadd.f32 0.0, %v950
        %v952 = vpop.f32.mrb[0].mxu0
        %v953 = vpop.f32.mrb[0].mxu0
        %v954 = vadd.f32 0.0, %v953
        %v955 = vpop.f32.mrb[0].mxu0
        %956 = vmatprep.mubr.bf16.mxu0 0
        %957 = vmatmul.mubr.bf16.gmra.mrb[0].mxu0 %v829
        %v958 = vpop.f32.mrb[0].mxu0
        %v959 = vadd.f32 0.0, %v958
        %v960 = vpop.f32.mrb[0].mxu0
        %v961 = vpop.f32.mrb[0].mxu0
        %v962 = vadd.f32 0.0, %v961
        %v963 = vpop.f32.mrb[0].mxu0
        %964 = vmatprep.mubr.bf16.mxu0 0
        %965 = vmatmul.mubr.bf16.gmra.mrb[0].mxu0 %v830
        %v966 = vpop.f32.mrb[0].mxu0
        %v967 = vadd.f32 0.0, %v966
        %v968 = vpop.f32.mrb[0].mxu0
        %v969 = vpop.f32.mrb[0].mxu0
        %v970 = vadd.f32 0.0, %v969
        %v971 = vpop.f32.mrb[0].mxu0
        %972 = vmatprep.mubr.bf16.mxu0 0
        %973 = vmatmul.mubr.bf16.gmra.mrb[0].mxu0 %v831
        %v974 = vpop.f32.mrb[0].mxu0
        %v975 = vadd.f32 0.0, %v974
        %v976 = vpop.f32.mrb[0].mxu0
        %v977 = vpop.f32.mrb[0].mxu0
        %v978 = vadd.f32 0.0, %v977
        %v979 = vpop.f32.mrb[0].mxu0
        %980 = vmatprep.mubr.bf16.mxu0 0
        %981 = vmatmul.mubr.bf16.gmra.mrb[0].mxu0 %v832
        %v982 = vpop.f32.mrb[0].mxu0
        %v983 = vadd.f32 0.0, %v982
        %v984 = vpop.f32.mrb[0].mxu0
        %v985 = vpop.f32.mrb[0].mxu0
        %v986 = vadd.f32 0.0, %v985
        %v987 = vpop.f32.mrb[0].mxu0
        %988 = vmatprep.mubr.bf16.mxu0 0
        %989 = vmatmul.mubr.bf16.gmra.mrb[0].mxu0 %v833
        %v990 = vpop.f32.mrb[0].mxu0
        %v991 = vadd.f32 0.0, %v990
        %v992 = vpop.f32.mrb[0].mxu0
        %v993 = vpop.f32.mrb[0].mxu0
        %v994 = vadd.f32 0.0, %v993
        %v995 = vpop.f32.mrb[0].mxu0
        %996 = vmatprep.mubr.bf16.mxu0 0
        %997 = vmatmul.mubr.bf16.gmra.mrb[0].mxu0 %v834
        %v998 = vpop.f32.mrb[0].mxu0
        %v999 = vadd.f32 0.0, %v998
        %v1000 = vpop.f32.mrb[0].mxu0
        %v1001 = vpop.f32.mrb[0].mxu0
        %v1002 = vadd.f32 0.0, %v1001
        %v1003 = vpop.f32.mrb[0].mxu0
        %1004 = vmatprep.mubr.bf16.mxu0 0
        %1005 = vmatmul.mubr.bf16.gmra.mrb[0].mxu0 %v835
        %v1006 = vpop.f32.mrb[0].mxu0
        %v1007 = vadd.f32 0.0, %v1006
        %v1008 = vpop.f32.mrb[0].mxu0
        %v1009 = vpop.f32.mrb[0].mxu0
        %v1010 = vadd.f32 0.0, %v1009
        %v1011 = vpop.f32.mrb[0].mxu0
        %1012 = vdwg.mxu0
        %v1013 = vmul.f32 %v598, %v887
        %v1014 = vmul.f32 %v601, %v890
        %v1015 = vmul.f32 %v606, %v895
        %v1016 = vmul.f32 %v609, %v898
        %v1017 = vmul.f32 %v614, %v903
        %v1018 = vmul.f32 %v617, %v906
        %v1019 = vmul.f32 %v622, %v911
        %v1020 = vmul.f32 %v625, %v914
        %v1021 = vmul.f32 %v630, %v919
        %v1022 = vmul.f32 %v633, %v922
        %v1023 = vmul.f32 %v638, %v927
        %v1024 = vmul.f32 %v641, %v930
        %v1025 = vmul.f32 %v646, %v935
        %v1026 = vmul.f32 %v649, %v938
        %v1027 = vmul.f32 %v654, %v943
        %v1028 = vmul.f32 %v657, %v946
        %v1029 = vadd.f32 %v662, %v951
        %v1030 = vadd.f32 %v665, %v954
        %v1031 = vadd.f32 %v670, %v959
        %v1032 = vadd.f32 %v673, %v962
        %v1033 = vadd.f32 %v678, %v967
        %v1034 = vadd.f32 %v681, %v970
        %v1035 = vadd.f32 %v686, %v975
        %v1036 = vadd.f32 %v689, %v978
        %v1037 = vadd.f32 %v694, %v983
        %v1038 = vadd.f32 %v697, %v986
        %v1039 = vadd.f32 %v702, %v991
        %v1040 = vadd.f32 %v705, %v994
        %v1041 = vadd.f32 %v710, %v999
        %v1042 = vadd.f32 %v713, %v1002
        %v1043 = vadd.f32 %v718, %v1007
        %v1044 = vadd.f32 %v721, %v1010
        %v1045 = vmax.f32 %v1029, 0.0
        %v1046 = vmax.f32 %v1030, 0.0
        %v1047 = vmax.f32 %v1031, 0.0
        %v1048 = vmax.f32 %v1032, 0.0
        %v1049 = vmax.f32 %v1033, 0.0
        %v1050 = vmax.f32 %v1034, 0.0
        %v1051 = vmax.f32 %v1035, 0.0
        %v1052 = vmax.f32 %v1036, 0.0
        %v1053 = vmax.f32 %v1037, 0.0
        %v1054 = vmax.f32 %v1038, 0.0
        %v1055 = vmax.f32 %v1039, 0.0
        %v1056 = vmax.f32 %v1040, 0.0
        %v1057 = vmax.f32 %v1041, 0.0
        %v1058 = vmax.f32 %v1042, 0.0
        %v1059 = vmax.f32 %v1043, 0.0
        %v1060 = vmax.f32 %v1044, 0.0
        %v1061 = vld [vmem:[#allocation7] sm:$0xf]
        %v1062 = vld [vmem:[#allocation7 + $0x4] sm:$0xf]
        %v1063 = vld [vmem:[#allocation7 + $0x8] sm:$0xf]
        %v1064 = vld [vmem:[#allocation7 + $0xc] sm:$0xf]
        %v1065 = vld [vmem:[#allocation7 + $0x10] sm:$0xf]
        %v1066 = vld [vmem:[#allocation7 + $0x14] sm:$0xf]
        %v1067 = vld [vmem:[#allocation7 + $0x18] sm:$0xf]
        %v1068 = vld [vmem:[#allocation7 + $0x1c] sm:$0xf]
        %v1069 = vld [vmem:[#allocation7 + $0x20] sm:$0xf]
        %v1070 = vld [vmem:[#allocation7 + $0x24] sm:$0xf]
        %v1071 = vld [vmem:[#allocation7 + $0x28] sm:$0xf]
        %v1072 = vld [vmem:[#allocation7 + $0x2c] sm:$0xf]
        %v1073 = vld [vmem:[#allocation7 + $0x30] sm:$0xf]
        %v1074 = vld [vmem:[#allocation7 + $0x34] sm:$0xf]
        %v1075 = vld [vmem:[#allocation7 + $0x38] sm:$0xf]
        %v1076 = vld [vmem:[#allocation7 + $0x3c] sm:$0xf]
        %v1077 = vpack.c.bf16 %v1046, %v1045
        %v1078 = vpack.c.bf16 %v1048, %v1047
        %v1079 = vpack.c.bf16 %v1050, %v1049
        %v1080 = vpack.c.bf16 %v1052, %v1051
        %v1081 = vpack.c.bf16 %v1054, %v1053
        %v1082 = vpack.c.bf16 %v1056, %v1055
        %v1083 = vpack.c.bf16 %v1058, %v1057
        %v1084 = vpack.c.bf16 %v1060, %v1059
        %v1085 = vld [vmem:[%s4] sm:$0xff]
        %v1086 = vld [vmem:[%s4 + $0x8] sm:$0xff]
        %v1087 = vld [vmem:[%s4 + $0x10] sm:$0xff]
        %v1088 = vld [vmem:[%s4 + $0x18] sm:$0xff]
        %v1089 = vld [vmem:[%s4 + $0x20] sm:$0xff]
        %v1090 = vld [vmem:[%s4 + $0x28] sm:$0xff]
        %v1091 = vld [vmem:[%s4 + $0x30] sm:$0xff]
        %v1092 = vld [vmem:[%s4 + $0x38] sm:$0xff]
        %v1093 = vld [vmem:[%s4 + $0x40] sm:$0xff]
        %v1094 = vld [vmem:[%s4 + $0x48] sm:$0xff]
        %v1095 = vld [vmem:[%s4 + $0x50] sm:$0xff]
        %v1096 = vld [vmem:[%s4 + $0x58] sm:$0xff]
        %v1097 = vld [vmem:[%s4 + $0x60] sm:$0xff]
        %v1098 = vld [vmem:[%s4 + $0x68] sm:$0xff]
        %v1099 = vld [vmem:[%s4 + $0x70] sm:$0xff]
        %v1100 = vld [vmem:[%s4 + $0x78] sm:$0xff]
        %1102 = vset.pattern.permute.xlu0 0
        %1103 = vperm.xlu0 %1102, %v1085
        %v1104 = vpop.permute.xlu0 %1103
        %1107 = vset.pattern.permute.xlu0 0
        %1108 = vperm.xlu0 %1107, %v1086
        %v1109 = vpop.permute.xlu0 %1108
        %1112 = vset.pattern.permute.xlu0 0
        %1113 = vperm.xlu0 %1112, %v1087
        %v1114 = vpop.permute.xlu0 %1113
        %1117 = vset.pattern.permute.xlu0 0
        %1118 = vperm.xlu0 %1117, %v1088
        %v1119 = vpop.permute.xlu0 %1118
        %1122 = vset.pattern.permute.xlu0 0
        %1123 = vperm.xlu0 %1122, %v1089
        %v1124 = vpop.permute.xlu0 %1123
        %1127 = vset.pattern.permute.xlu0 0
        %1128 = vperm.xlu0 %1127, %v1090
        %v1129 = vpop.permute.xlu0 %1128
        %1132 = vset.pattern.permute.xlu0 0
        %1133 = vperm.xlu0 %1132, %v1091
        %v1134 = vpop.permute.xlu0 %1133
        %1137 = vset.pattern.permute.xlu0 0
        %1138 = vperm.xlu0 %1137, %v1092
        %v1139 = vpop.permute.xlu0 %1138
        %1142 = vset.pattern.permute.xlu0 0
        %1143 = vperm.xlu0 %1142, %v1093
        %v1144 = vpop.permute.xlu0 %1143
        %1147 = vset.pattern.permute.xlu0 0
        %1148 = vperm.xlu0 %1147, %v1094
        %v1149 = vpop.permute.xlu0 %1148
        %1152 = vset.pattern.permute.xlu0 0
        %1153 = vperm.xlu0 %1152, %v1095
        %v1154 = vpop.permute.xlu0 %1153
        %1157 = vset.pattern.permute.xlu0 0
        %1158 = vperm.xlu0 %1157, %v1096
        %v1159 = vpop.permute.xlu0 %1158
        %1162 = vset.pattern.permute.xlu0 0
        %1163 = vperm.xlu0 %1162, %v1097
        %v1164 = vpop.permute.xlu0 %1163
        %1167 = vset.pattern.permute.xlu0 0
        %1168 = vperm.xlu0 %1167, %v1098
        %v1169 = vpop.permute.xlu0 %1168
        %1172 = vset.pattern.permute.xlu0 0
        %1173 = vperm.xlu0 %1172, %v1099
        %v1174 = vpop.permute.xlu0 %1173
        %1177 = vset.pattern.permute.xlu0 0
        %1178 = vperm.xlu0 %1177, %v1100
        %v1179 = vpop.permute.xlu0 %1178
        %v1197 = vunpack.c.l.b16 %v1061
        %v1198 = vunpack.c.l.b16 %v1062
        %v1199 = vunpack.c.l.b16 %v1063
        %v1200 = vunpack.c.l.b16 %v1064
        %v1201 = vunpack.c.l.b16 %v1065
        %v1202 = vunpack.c.l.b16 %v1066
        %v1203 = vunpack.c.l.b16 %v1067
        %v1204 = vunpack.c.l.b16 %v1068
        %v1205 = vunpack.c.l.b16 %v1069
        %v1206 = vunpack.c.l.b16 %v1070
        %v1207 = vunpack.c.l.b16 %v1071
        %v1208 = vunpack.c.l.b16 %v1072
        %v1209 = vunpack.c.l.b16 %v1073
        %v1210 = vunpack.c.l.b16 %v1074
        %v1211 = vunpack.c.l.b16 %v1075
        %v1212 = vunpack.c.l.b16 %v1076
        %v1213 = vpack.c.b16 %v1198, %v1197
        %v1214 = vpack.c.b16 %v1200, %v1199
        %v1215 = vpack.c.b16 %v1202, %v1201
        %v1216 = vpack.c.b16 %v1204, %v1203
        %v1217 = vpack.c.b16 %v1206, %v1205
        %v1218 = vpack.c.b16 %v1208, %v1207
        %v1219 = vpack.c.b16 %v1210, %v1209
        %v1220 = vpack.c.b16 %v1212, %v1211
        %1229 = vmatprep.subr.bf16.mxu0 0
        %1230 = vmatpush1.bf16.msra.mxu0 %v1077
        %1231 = vmatprep.subr.bf16.mxu0 0
        %1232 = vmatpush1.bf16.msra.mxu0 %v1078
        %1233 = vmatprep.subr.bf16.mxu0 0
        %1234 = vmatpush1.bf16.msra.mxu0 %v1079
        %1235 = vmatprep.subr.bf16.mxu0 0
        %1236 = vmatpush1.bf16.msra.mxu0 %v1080
        %1237 = vmatprep.subr.bf16.mxu0 0
        %1238 = vmatpush1.bf16.msra.mxu0 %v1081
        %1239 = vmatprep.subr.bf16.mxu0 0
        %1240 = vmatpush1.bf16.msra.mxu0 %v1082
        %1241 = vmatprep.subr.bf16.mxu0 0
        %1242 = vmatpush1.bf16.msra.mxu0 %v1083
        %1243 = vmatprep.subr.bf16.mxu0 0
        %1244 = vmatpush1.bf16.msra.mxu0 %v1084
        %1245 = vmatprep.subr.bf16.mxu0 0
        %1246 = vmatpush1.bf16.msra.mxu0 0
        %1247 = vmatprep.subr.bf16.mxu0 0
        %1248 = vmatpush1.bf16.msra.mxu0 0
        %1249 = vmatprep.subr.bf16.mxu0 0
        %1250 = vmatpush1.bf16.msra.mxu0 0
        %1251 = vmatprep.subr.bf16.mxu0 0
        %1252 = vmatpush1.bf16.msra.mxu0 0
        %1253 = vmatprep.subr.bf16.mxu0 0
        %1254 = vmatpush1.bf16.msra.mxu0 0
        %1255 = vmatprep.subr.bf16.mxu0 0
        %1256 = vmatpush1.bf16.msra.mxu0 0
        %1257 = vmatprep.subr.bf16.mxu0 0
        %1258 = vmatpush1.bf16.msra.mxu0 0
        %1259 = vmatprep.subr.bf16.mxu0 0
        %1260 = vmatpush1.bf16.msra.mxu0 0
        %1261 = vmatprep.mubr.bf16.mxu0 0
        %1262 = vmatmul.mubr.bf16.gmra.mrb[0].mxu0 %v1213
        %v1263 = vpop.f32.mrb[0].mxu0
        %v1264 = vadd.f32 %v1104, %v1263
        %v1265 = vpop.f32.mrb[0].mxu0
        %v1266 = vpop.f32.mrb[0].mxu0
        %v1267 = vadd.f32 %v1109, %v1266
        %v1268 = vpop.f32.mrb[0].mxu0
        %1269 = vmatprep.mubr.bf16.mxu0 0
        %1270 = vmatmul.mubr.bf16.gmra.mrb[0].mxu0 %v1214
        %v1271 = vpop.f32.mrb[0].mxu0
        %v1272 = vadd.f32 %v1114, %v1271
        %v1273 = vpop.f32.mrb[0].mxu0
        %v1274 = vpop.f32.mrb[0].mxu0
        %v1275 = vadd.f32 %v1119, %v1274
        %v1276 = vpop.f32.mrb[0].mxu0
        %1277 = vmatprep.mubr.bf16.mxu0 0
        %1278 = vmatmul.mubr.bf16.gmra.mrb[0].mxu0 %v1215
        %v1279 = vpop.f32.mrb[0].mxu0
        %v1280 = vadd.f32 %v1124, %v1279
        %v1281 = vpop.f32.mrb[0].mxu0
        %v1282 = vpop.f32.mrb[0].mxu0
        %v1283 = vadd.f32 %v1129, %v1282
        %v1284 = vpop.f32.mrb[0].mxu0
        %1285 = vmatprep.mubr.bf16.mxu0 0
        %1286 = vmatmul.mubr.bf16.gmra.mrb[0].mxu0 %v1216
        %v1287 = vpop.f32.mrb[0].mxu0
        %v1288 = vadd.f32 %v1134, %v1287
        %v1289 = vpop.f32.mrb[0].mxu0
        %v1290 = vpop.f32.mrb[0].mxu0
        %v1291 = vadd.f32 %v1139, %v1290
        %v1292 = vpop.f32.mrb[0].mxu0
        %1293 = vmatprep.mubr.bf16.mxu0 0
        %1294 = vmatmul.mubr.bf16.gmra.mrb[0].mxu0 %v1217
        %v1295 = vpop.f32.mrb[0].mxu0
        %v1296 = vadd.f32 %v1144, %v1295
        %v1297 = vpop.f32.mrb[0].mxu0
        %v1298 = vpop.f32.mrb[0].mxu0
        %v1299 = vadd.f32 %v1149, %v1298
        %v1300 = vpop.f32.mrb[0].mxu0
        %1301 = vmatprep.mubr.bf16.mxu0 0
        %1302 = vmatmul.mubr.bf16.gmra.mrb[0].mxu0 %v1218
        %v1303 = vpop.f32.mrb[0].mxu0
        %v1304 = vadd.f32 %v1154, %v1303
        %v1305 = vpop.f32.mrb[0].mxu0
        %v1306 = vpop.f32.mrb[0].mxu0
        %v1307 = vadd.f32 %v1159, %v1306
        %v1308 = vpop.f32.mrb[0].mxu0
        %1309 = vmatprep.mubr.bf16.mxu0 0
        %1310 = vmatmul.mubr.bf16.gmra.mrb[0].mxu0 %v1219
        %v1311 = vpop.f32.mrb[0].mxu0
        %v1312 = vadd.f32 %v1164, %v1311
        %v1313 = vpop.f32.mrb[0].mxu0
        %v1314 = vpop.f32.mrb[0].mxu0
        %v1315 = vadd.f32 %v1169, %v1314
        %v1316 = vpop.f32.mrb[0].mxu0
        %1317 = vmatprep.mubr.bf16.mxu0 0
        %1318 = vmatmul.mubr.bf16.gmra.mrb[0].mxu0 %v1220
        %v1319 = vpop.f32.mrb[0].mxu0
        %v1320 = vadd.f32 %v1174, %v1319
        %v1321 = vpop.f32.mrb[0].mxu0
        %v1322 = vpop.f32.mrb[0].mxu0
        %v1323 = vadd.f32 %v1179, %v1322
        %v1324 = vpop.f32.mrb[0].mxu0
        %1325 = vdwg.mxu0
        %v1326 = vmax.f32 %v1264, 0.0
        %v1327 = vmax.f32 %v1267, 0.0
        %v1328 = vmax.f32 %v1272, 0.0
        %v1329 = vmax.f32 %v1275, 0.0
        %v1330 = vmax.f32 %v1280, 0.0
        %v1331 = vmax.f32 %v1283, 0.0
        %v1332 = vmax.f32 %v1288, 0.0
        %v1333 = vmax.f32 %v1291, 0.0
        %v1334 = vmax.f32 %v1296, 0.0
        %v1335 = vmax.f32 %v1299, 0.0
        %v1336 = vmax.f32 %v1304, 0.0
        %v1337 = vmax.f32 %v1307, 0.0
        %v1338 = vmax.f32 %v1312, 0.0
        %v1339 = vmax.f32 %v1315, 0.0
        %v1340 = vmax.f32 %v1320, 0.0
        %v1341 = vmax.f32 %v1323, 0.0
        %v1342 = vld [vmem:[%s5] sm:$0xff]
        %1343 = vmatprep.subr.mxu0 0.0
        %1344 = vmatpush1.msra.mxu0 %v1013
        %1345 = vmatprep.subr.mxu0 0.0
        %1346 = vmatpush1.msra.mxu0 %v1014
        %1347 = vmatprep.subr.mxu0 0.0
        %1348 = vmatpush1.msra.mxu0 %v1015
        %1349 = vmatprep.subr.mxu0 0.0
        %1350 = vmatpush1.msra.mxu0 %v1016
        %1351 = vmatprep.subr.mxu0 0.0
        %1352 = vmatpush1.msra.mxu0 %v1017
        %1353 = vmatprep.subr.mxu0 0.0
        %1354 = vmatpush1.msra.mxu0 %v1018
        %1355 = vmatprep.subr.mxu0 0.0
        %1356 = vmatpush1.msra.mxu0 %v1019
        %1357 = vmatprep.subr.mxu0 0.0
        %1358 = vmatpush1.msra.mxu0 %v1020
        %1359 = vmatprep.subr.mxu0 0.0
        %1360 = vmatpush1.msra.mxu0 %v1021
        %1361 = vmatprep.subr.mxu0 0.0
        %1362 = vmatpush1.msra.mxu0 %v1022
        %1363 = vmatprep.subr.mxu0 0.0
        %1364 = vmatpush1.msra.mxu0 %v1023
        %1365 = vmatprep.subr.mxu0 0.0
        %1366 = vmatpush1.msra.mxu0 %v1024
        %1367 = vmatprep.subr.mxu0 0.0
        %1368 = vmatpush1.msra.mxu0 %v1025
        %1369 = vmatprep.subr.mxu0 0.0
        %1370 = vmatpush1.msra.mxu0 %v1026
        %1371 = vmatprep.subr.mxu0 0.0
        %1372 = vmatpush1.msra.mxu0 %v1027
        %1373 = vmatprep.subr.mxu0 0.0
        %1374 = vmatpush1.msra.mxu0 %v1028
        %1375 = vmatprep.subr.mxu0 0.0
        %1376 = vmatpush1.msra.mxu0 0.0
        %1377 = vmatprep.subr.mxu0 0.0
        %1378 = vmatpush1.msra.mxu0 0.0
        %1379 = vmatprep.subr.mxu0 0.0
        %1380 = vmatpush1.msra.mxu0 0.0
        %1381 = vmatprep.subr.mxu0 0.0
        %1382 = vmatpush1.msra.mxu0 0.0
        %1383 = vmatprep.subr.mxu0 0.0
        %1384 = vmatpush1.msra.mxu0 0.0
        %1385 = vmatprep.subr.mxu0 0.0
        %1386 = vmatpush1.msra.mxu0 0.0
        %1387 = vmatprep.subr.mxu0 0.0
        %1388 = vmatpush1.msra.mxu0 0.0
        %1389 = vmatprep.subr.mxu0 0.0
        %1390 = vmatpush1.msra.mxu0 0.0
        %1391 = vmatprep.subr.mxu0 0.0
        %1392 = vmatpush1.msra.mxu0 0.0
        %1393 = vmatprep.subr.mxu0 0.0
        %1394 = vmatpush1.msra.mxu0 0.0
        %1395 = vmatprep.subr.mxu0 0.0
        %1396 = vmatpush1.msra.mxu0 0.0
        %1397 = vmatprep.subr.mxu0 0.0
        %1398 = vmatpush1.msra.mxu0 0.0
        %1399 = vmatprep.subr.mxu0 0.0
        %1400 = vmatpush1.msra.mxu0 0.0
        %1401 = vmatprep.subr.mxu0 0.0
        %1402 = vmatpush1.msra.mxu0 0.0
        %1403 = vmatprep.subr.mxu0 0.0
        %1404 = vmatpush1.msra.mxu0 0.0
        %1405 = vmatprep.subr.mxu0 0.0
        %1406 = vmatpush1.msra.mxu0 0.0
        %1407 = vmatprep.mubr.f32.mxu0 0.0
        %1408 = vmatmul.mubr.f32.gmra.mrb[0].mxu0 %v1342
        %v1409 = vpop.f32.mrb[0].mxu0
        %v1410 = vadd.f32 0.0, %v1409
        %v1411 = vpop.f32.mrb[0].mxu0
        %1412 = vdwg.mxu0
        %1413 = vmatprep.subr.mxu0 0.0
        %1414 = vmatpush1.msra.mxu0 %v1326
        %1415 = vmatprep.subr.mxu0 0.0
        %1416 = vmatpush1.msra.mxu0 %v1327
        %1417 = vmatprep.subr.mxu0 0.0
        %1418 = vmatpush1.msra.mxu0 %v1328
        %1419 = vmatprep.subr.mxu0 0.0
        %1420 = vmatpush1.msra.mxu0 %v1329
        %1421 = vmatprep.subr.mxu0 0.0
        %1422 = vmatpush1.msra.mxu0 %v1330
        %1423 = vmatprep.subr.mxu0 0.0
        %1424 = vmatpush1.msra.mxu0 %v1331
        %1425 = vmatprep.subr.mxu0 0.0
        %1426 = vmatpush1.msra.mxu0 %v1332
        %1427 = vmatprep.subr.mxu0 0.0
        %1428 = vmatpush1.msra.mxu0 %v1333
        %1429 = vmatprep.subr.mxu0 0.0
        %1430 = vmatpush1.msra.mxu0 %v1334
        %1431 = vmatprep.subr.mxu0 0.0
        %1432 = vmatpush1.msra.mxu0 %v1335
        %1433 = vmatprep.subr.mxu0 0.0
        %1434 = vmatpush1.msra.mxu0 %v1336
        %1435 = vmatprep.subr.mxu0 0.0
        %1436 = vmatpush1.msra.mxu0 %v1337
        %1437 = vmatprep.subr.mxu0 0.0
        %1438 = vmatpush1.msra.mxu0 %v1338
        %1439 = vmatprep.subr.mxu0 0.0
        %1440 = vmatpush1.msra.mxu0 %v1339
        %1441 = vmatprep.subr.mxu0 0.0
        %1442 = vmatpush1.msra.mxu0 %v1340
        %1443 = vmatprep.subr.mxu0 0.0
        %1444 = vmatpush1.msra.mxu0 %v1341
        %1445 = vmatprep.subr.mxu0 0.0
        %1446 = vmatpush1.msra.mxu0 0.0
        %1447 = vmatprep.subr.mxu0 0.0
        %1448 = vmatpush1.msra.mxu0 0.0
        %1449 = vmatprep.subr.mxu0 0.0
        %1450 = vmatpush1.msra.mxu0 0.0
        %1451 = vmatprep.subr.mxu0 0.0
        %1452 = vmatpush1.msra.mxu0 0.0
        %1453 = vmatprep.subr.mxu0 0.0
        %1454 = vmatpush1.msra.mxu0 0.0
        %1455 = vmatprep.subr.mxu0 0.0
        %1456 = vmatpush1.msra.mxu0 0.0
        %1457 = vmatprep.subr.mxu0 0.0
        %1458 = vmatpush1.msra.mxu0 0.0
        %1459 = vmatprep.subr.mxu0 0.0
        %1460 = vmatpush1.msra.mxu0 0.0
        %1461 = vmatprep.subr.mxu0 0.0
        %1462 = vmatpush1.msra.mxu0 0.0
        %1463 = vmatprep.subr.mxu0 0.0
        %1464 = vmatpush1.msra.mxu0 0.0
        %1465 = vmatprep.subr.mxu0 0.0
        %1466 = vmatpush1.msra.mxu0 0.0
        %1467 = vmatprep.subr.mxu0 0.0
        %1468 = vmatpush1.msra.mxu0 0.0
        %1469 = vmatprep.subr.mxu0 0.0
        %1470 = vmatpush1.msra.mxu0 0.0
        %1471 = vmatprep.subr.mxu0 0.0
        %1472 = vmatpush1.msra.mxu0 0.0
        %1473 = vmatprep.subr.mxu0 0.0
        %1474 = vmatpush1.msra.mxu0 0.0
        %1475 = vmatprep.subr.mxu0 0.0
        %1476 = vmatpush1.msra.mxu0 0.0
        %1477 = vmatprep.mubr.f32.mxu0 0.0
        %1478 = vmatmul.mubr.f32.gmra.mrb[0].mxu0 %v1342
        %v1479 = vpop.f32.mrb[0].mxu0
        %v1480 = vadd.f32 0.0, %v1479
        %v1481 = vpop.f32.mrb[0].mxu0
        %1482 = vdwg.mxu0
        %v1484 = vrot.slane %v1480, 1
        %v1486 = vadd.f32 %v1410, %v1484
        %1487 = vst [vmem:[%s294] sm:$0x1] %v1486
        %s1488 = sand.u32 %s163, 1
        %s1489 = scalar_lea.sflag [#allocation4], %s1488
        %s1490 = sand.u32 %s163, 1
        %s1491 = scalar_lea.vmem [#allocation8], %s1490
        // Predicated region
        $region57: #{tpu_custom_call.1} parent=43 // pred_check
          %p1492 = pneg %p173
        $region58: #{tpu_custom_call.1} parent=43 // pred_check_branch
          %1494 = sbr.rel (%p1492) target = $region60
        $region59: #{tpu_custom_call.1} parent=43 // pred_region
          %s1496 = ssub.s32 16, 16
          %1497 = vsyncadd %s1489, %s1496
          %s1498 = smul.addr %s24, 16
          %s1499 = scalar_lea.hbm %s6, %s1498
          %s1501 = sshll.u32 %s1491, 4
          %s1502 = int_to_ptr.vmem [resolvable:$true] %s1501
          %1504 = dma.vmem_to_hbm [thread:$0]  %s1502, 16, %s1499, %s1489
        $region60: #{tpu_custom_call.1} parent=43 // pred_fallthru
          _
      $region44: #{tpu_custom_call.1} parent=5 // pred_fallthru
        _
      %p1505 = scmp.le.s32.totalorder 2, %s19
      // Predicated region
      $region61: #{tpu_custom_call.1} parent=5 // pred_check
        %p1506 = pneg %p1505
      $region62: #{tpu_custom_call.1} parent=5 // pred_check_branch
        %1508 = sbr.rel (%p1506) target = $region64
      $region63: #{tpu_custom_call.1} parent=5 // pred_region
        %s1509 = ssub.s32 %s19, 2
        // Predicated region
        $region65: #{tpu_custom_call.1} parent=63 // pred_check
          %p1510 = pneg %p179
        $region66: #{tpu_custom_call.1} parent=63 // pred_check_branch
          %1512 = sbr.rel (%p1510) target = $region68
        $region67: #{tpu_custom_call.1} parent=63 // pred_region
          %s1513 = sand.u32 %s164, 1
          %s1514 = scalar_lea.sflag [#allocation4], %s1513
          %s1515 = sand.u32 %s164, 1
          %s1516 = scalar_lea.vmem [#allocation8], %s1515
          %1517 = dma.done %s1514, 16
        $region68: #{tpu_custom_call.1} parent=63 // pred_fallthru
          _
      $region64: #{tpu_custom_call.1} parent=5 // pred_fallthru
        _
    $region6: #{tpu_custom_call.1} parent=1 // loop_footer
      %s23 = sadd.s32 1, %s19
    $region7: #{tpu_custom_call.1} parent=1 // loop_footer_branch
      %18 = sbr.rel target = $region3
    $region8: #{tpu_custom_call.1} parent=1 // loop_exit
      _
    %1518 = vsyncpa [#allocation3], 1
    %s1519 = scalar_lea.sflag [#allocation3], 1
    %1520 = vsyncpa %s1519, 1
    %1521 = vsyncpa [#allocation6], 1
    %1522 = vsyncpa [#allocation4], 1
    %s1523 = scalar_lea.sflag [#allocation4], 1
    %1524 = vsyncpa %s1523, 1

</llo_original>
